<compile_context>
chip_gen: v5e
topology: v5e:2x2
jax: 0.10.0
libtpu: 0.0.40
codegen_flags: <defaults>
</compile_context>

<pallas_src>
import functools

import jax
import jax.numpy as jnp
from jax import lax
from jax.experimental import pallas as pl
from jax.experimental.pallas import tpu as pltpu


def _round_up(x, m):
    return (x + m - 1) // m * m


def _interp_matrix(out_size, in_size):
    """1-D linear interpolation matrix matching torch.nn.functional.interpolate
    (mode='bilinear', align_corners=True) along a single axis."""
    if in_size == out_size:
        return jnp.eye(out_size, dtype=jnp.float32)
    if in_size == 1:
        return jnp.ones((out_size, 1), dtype=jnp.float32)
    if out_size == 1:
        return jnp.zeros((1, in_size), dtype=jnp.float32).at[0, 0].set(1.0)
    x = jnp.arange(out_size, dtype=jnp.float32) * (in_size - 1) / (out_size - 1)
    i0 = jnp.clip(jnp.floor(x).astype(jnp.int32), 0, in_size - 1)
    i1 = jnp.minimum(i0 + 1, in_size - 1)
    w1 = x - i0.astype(jnp.float32)
    w0 = 1.0 - w1
    rows = jnp.arange(out_size)
    m = jnp.zeros((out_size, in_size), dtype=jnp.float32)
    m = m.at[rows, i0].add(w0)
    m = m.at[rows, i1].add(w1)
    return m


def _fused_kernel(*refs, levels, has_interp, max_disp):
    """One grid step: a block of B planes, all supervision levels.

    refs layout:
      [0]         reference block              (B, H, W)      f32
      [1 .. L]    prediction blocks            (B, hp_i, w_i) f32 (scale 1) / bf16
      then for every level i with has_interp[i] (in level order):
          mh_i    (H, hp_i)  bf16  row-interp matrix, pre-scaled by 2**i
          mwt_i   (w_i, W)   bf16  transposed column-interp matrix
      [-1]        partial-sum output block     (1, L+1, W)    f32
                   rows 0..L-1 : per-level masked smooth-L1 lane partials
                   row  L      : valid-pixel-count lane partials
    """
    L = levels
    ref_ref = refs[0]
    pred_refs = refs[1:1 + L]
    idx = 1 + L
    mh_refs = [None] * L
    mwt_refs = [None] * L
    for i in range(L):
        if has_interp[i]:
            mh_refs[i] = refs[idx]
            mwt_refs[i] = refs[idx + 1]
            idx += 2
    out_ref = refs[idx]

    B, H, W = ref_ref.shape

    ref_blk = ref_ref[...]                                     # (B, H, W) f32
    mask = jnp.logical_and(ref_blk > 0.0, ref_blk < max_disp).astype(jnp.float32)

    rows = [None] * (L + 1)
    # Valid-pixel-count lane partial: reduce batch dim (VPU adds) then sublanes.
    rows[L] = jnp.sum(jnp.sum(mask, axis=0), axis=0, keepdims=True)   # (1, W)

    for i in range(L):
        if not has_interp[i]:
            # scale == 1: prediction already at full resolution (exact, f32).
            up = pred_refs[i][...]                             # (B, H, W) f32
        else:
            pred = pred_refs[i][...]                           # (B, hp, w) bf16
            hp, w = pred.shape[1], pred.shape[2]
            mwt = mwt_refs[i][...]                             # (w, W)  bf16
            mh = mh_refs[i][...]                               # (H, hp) bf16

            # Column upsample: one stacked 2-D MXU matmul over all B planes
            # (hp is a multiple of 16 so the reshape is layout-free).
            uw = jnp.dot(pred.reshape(B * hp, w), mwt,
                         preferred_element_type=jnp.float32)   # (B*hp, W) f32
            uw = uw.reshape(B, hp, W).astype(jnp.bfloat16)     # single cast/level

            # Row upsample: one batched MXU matmul per level; mh already
            # carries the 2**level disparity rescale.
            mh_b = jnp.broadcast_to(mh, (B, H, hp))
            up = jnp.einsum('bij,bjk->bik', mh_b, uw,
                            preferred_element_type=jnp.float32)  # (B, H, W) f32

        diff = up - ref_blk
        adiff = jnp.abs(diff)
        sl1 = jnp.where(adiff < 1.0, 0.5 * diff * diff, adiff - 0.5)
        rows[i] = jnp.sum(jnp.sum(sl1 * mask, axis=0), axis=0, keepdims=True)

    # Single lane-partial store per grid step.
    out_ref[...] = jnp.concatenate(rows, axis=0)[None, :, :]


def _plan(nc, H, W, pred_dims, has_interp, L, max_planes=8):
    """Pick planes-per-step B, grid size G and plane padding, generation-aware."""
    try:
        vmem_cap = int(pltpu.get_tpu_info().vmem_capacity_bytes)
    except Exception:                                          # pragma: no cover
        vmem_cap = 64 * 1024 * 1024                            # conservative (v7x)
    vmem_limit = min(int(0.70 * vmem_cap), 112 * 1024 * 1024)

    # Footprint model: BlockSpec inputs double-buffered (x2); temps single copy.
    per_plane = 2 * 4 * H * W                                  # reference block
    fixed = 2 * 4 * (L + 1) * W                                # output block
    for i in range(L):
        hp, w = pred_dims[i]
        if has_interp[i]:
            per_plane += 2 * 2 * hp * w                        # bf16 pred block
            per_plane += 4 * hp * W + 2 * hp * W               # uw f32 + bf16
            per_plane += 4 * H * W                             # up f32
            per_plane += 2 * H * hp                            # mh broadcast
            fixed += 2 * (2 * H * hp + 2 * w * W)              # interp matrices
        else:
            per_plane += 2 * 4 * hp * w                        # f32 pred block
    per_plane += 3 * 4 * H * W                                 # mask/diff/sl1 temps

    budget = int(0.85 * vmem_limit) - fixed - (2 << 20)
    cap = max(1, min(max_planes, budget // per_plane if per_plane > 0 else 1))
    if nc >= 2:
        cap = max(1, min(cap, nc // 2))        # keep >= 2 grid steps (v7x: 2 TCs)

    divisors = [b for b in range(1, cap + 1) if nc % b == 0]
    best_div = max(divisors)
    if best_div * 2 >= cap:
        B = best_div                                           # no padding needed
    else:
        B = cap                                                # pad plane axis
    G = -(-nc // B)
    pad = G * B - nc
    # TODO(synk): for very large H,W where even B=1 overflows the v7x 64 MiB
    # VMEM, add an H-tile grid axis (overlapping row bands) instead of failing.
    return B, G, pad, vmem_limit


def l1_multiscale_loss(predictions, reference, *, supervision_levels,
                       max_disparity, scale_weights=None,
                       normalize_weights=True):
    """JAX/Pallas equivalent of l1_multiscale_loss.forward with mask=None."""
    # TODO(synk): the explicit non-None `mask` argument of the PyTorch module is
    # not plumbed through; this implements the mask=None path only.
    assert predictions[0].shape == reference.shape
    assert reference.ndim == 4
    N, C, H, W = reference.shape
    L = supervision_levels

    if scale_weights is None:
        weights = [1.0 / L] * L
    else:
        weights = list(scale_weights)
        if normalize_weights:
            tot = sum(scale_weights)
            weights = [wgt / tot for wgt in weights]

    NC = N * C
    ref_nc = reference.reshape(NC, H, W).astype(jnp.float32)

    preds = []
    interp_mats = []        # (mh, mwt) or None, per level
    has_interp = []
    pred_dims = []          # (hp, w) actually shipped per level
    for i in range(L):
        scale = 2 ** i
        p = predictions[i]
        h, w = p.shape[2], p.shape[3]
        if scale == 1:
            assert (h, w) == (H, W)
            # Full-resolution prediction kept f32 (exact identity path).
            preds.append(p.reshape(NC, h, w).astype(jnp.float32))
            interp_mats.append(None)
            has_interp.append(False)
            pred_dims.append((h, w))
        else:
            assert h * scale == H and w * scale == W, (h, w, scale, H, W)
            hp = _round_up(h, 16)            # bf16 sublane multiple -> free reshape
            p_bf = p.reshape(NC, h, w).astype(jnp.bfloat16)
            if hp != h:
                p_bf = jnp.pad(p_bf, ((0, 0), (0, hp - h), (0, 0)))
            # bf16 matmul operands (f32 MXU accumulation); the 2**level rescale
            # is a power of two -> exact when folded into the bf16 row matrix.
            mh = (_interp_matrix(H, h) * float(scale)).astype(jnp.bfloat16)
            if hp != h:
                mh = jnp.pad(mh, ((0, 0), (0, hp - h)))
            mwt = _interp_matrix(W, w).T.astype(jnp.bfloat16)
            preds.append(p_bf)
            interp_mats.append((mh, mwt))
            has_interp.append(True)
            pred_dims.append((hp, w))

    B, G, pad_planes, vmem_limit = _plan(NC, H, W, pred_dims, has_interp, L)
    if pad_planes:
        # Padded planes have reference == 0 -> mask == 0 -> contribute nothing.
        ref_nc = jnp.pad(ref_nc, ((0, pad_planes), (0, 0), (0, 0)))
        preds = [jnp.pad(p, ((0, pad_planes), (0, 0), (0, 0))) for p in preds]
    NCP = NC + pad_planes

    inputs = [ref_nc]
    in_specs = [pl.BlockSpec((B, H, W), lambda g: (g, 0, 0))]
    for i in range(L):
        hp, w = pred_dims[i]
        inputs.append(preds[i])
        in_specs.append(pl.BlockSpec((B, hp, w), lambda g: (g, 0, 0)))
    for i in range(L):
        if has_interp[i]:
            mh, mwt = interp_mats[i]
            inputs.append(mh)
            in_specs.append(pl.BlockSpec(mh.shape, lambda g: (0, 0)))
            inputs.append(mwt)
            in_specs.append(pl.BlockSpec(mwt.shape, lambda g: (0, 0)))

    kernel = functools.partial(
        _fused_kernel, levels=L, has_interp=tuple(has_interp),
        max_disp=float(max_disparity))

    flops = 0
    for i, (hp, w) in enumerate(pred_dims):
        if has_interp[i]:
            flops += 2 * NCP * (hp * w * W + H * hp * W)
    bytes_accessed = sum(int(x.size) * x.dtype.itemsize for x in inputs)
    bytes_accessed += G * (L + 1) * W * 4
    cost = pl.CostEstimate(flops=flops, transcendentals=0,
                           bytes_accessed=int(bytes_accessed))

    partials = pl.pallas_call(
        kernel,
        out_shape=jax.ShapeDtypeStruct((G, L + 1, W), jnp.float32),
        grid_spec=pltpu.PrefetchScalarGridSpec(
            num_scalar_prefetch=0,
            grid=(G,),
            in_specs=in_specs,
            out_specs=pl.BlockSpec((1, L + 1, W), lambda g: (g, 0, 0))),
        compiler_params=pltpu.CompilerParams(
            dimension_semantics=("parallel",),
            vmem_limit_bytes=int(vmem_limit)),
        cost_estimate=cost,
    )(*inputs)

    totals = jnp.sum(partials, axis=(0, 2))                    # (L+1,)
    # Guard the valid-pixel count (PyTorch would yield NaN on an empty mask).
    cnt = jnp.maximum(totals[L], 1.0)
    w_vec = jnp.asarray(weights, jnp.float32)
    return jnp.dot(w_vec, totals[:L]) / cnt


def _ref_loss(predictions, reference, supervision_levels, max_disparity):
    """Pure-JAX reference mirroring the kernel's precision choices exactly
    (bf16 prediction values, bf16 interp matrices, bf16 column intermediate)."""
    H, W = reference.shape[2], reference.shape[3]
    mask = ((reference > 0) & (reference < max_disparity)).astype(jnp.float32)
    cnt = jnp.maximum(jnp.sum(mask), 1.0)
    loss = jnp.float32(0.0)
    wgt = 1.0 / supervision_levels
    for i in range(supervision_levels):
        scale = 2 ** i
        pred = predictions[i].astype(jnp.float32)
        h, w = pred.shape[2], pred.shape[3]
        if scale == 1:
            up = pred
        else:
            p16 = pred.astype(jnp.bfloat16).astype(jnp.float32)
            mw16 = _interp_matrix(W, w).astype(jnp.bfloat16).astype(jnp.float32)
            mh16 = (_interp_matrix(H, h) * scale).astype(jnp.bfloat16).astype(jnp.float32)
            uw = jnp.einsum('nchw,Ww->nchW', p16, mw16)
            uw = uw.astype(jnp.bfloat16).astype(jnp.float32)
            up = jnp.einsum('Hh,nchW->ncHW', mh16, uw)
        diff = up - reference
        ad = jnp.abs(diff)
        sl1 = jnp.where(ad < 1.0, 0.5 * diff * diff, ad - 0.5)
        loss = loss + wgt * jnp.sum(sl1 * mask) / cnt
    return loss


if __name__ == "__main__":
    key = jax.random.PRNGKey(0)
    N, C, H, W = 2, 4, 32, 32
    supervision_levels = 3
    max_disparity = 64.0

    keys = jax.random.split(key, supervision_levels + 1)
    # Reference disparity with some out-of-range values to exercise the mask.
    reference = jax.random.uniform(keys[0], (N, C, H, W), jnp.float32, -8.0, 72.0)
    predictions = []
    for i in range(supervision_levels):
        s = 2 ** i
        predictions.append(jax.random.uniform(
            keys[i + 1], (N, C, H // s, W // s), jnp.float32,
            0.0, max_disparity / s))

    loss = l1_multiscale_loss(predictions, reference,
                              supervision_levels=supervision_levels,
                              max_disparity=max_disparity)
    loss = jax.block_until_ready(loss)

    ref = _ref_loss(predictions, reference, supervision_levels, max_disparity)
    assert jnp.isfinite(loss), loss
    # Tolerance covers accumulation-order differences of the MXU data path.
    assert jnp.allclose(loss, ref, rtol=2e-3, atol=2e-3), (loss, ref)
    print("KERNEL_OK")
</pallas_src>

<mosaic_0001>
module attributes {stable_mosaic.version = 11 : i64} {
  func.func @_fused_kernel(%arg0: i32, %arg1: memref<4x32x32xf32, #tpu.memory_space<vmem>>, %arg2: memref<4x32x32xf32, #tpu.memory_space<vmem>>, %arg3: memref<4x16x16xbf16, #tpu.memory_space<vmem>>, %arg4: memref<4x16x8xbf16, #tpu.memory_space<vmem>>, %arg5: memref<32x16xbf16, #tpu.memory_space<vmem>>, %arg6: memref<16x32xbf16, #tpu.memory_space<vmem>>, %arg7: memref<32x16xbf16, #tpu.memory_space<vmem>>, %arg8: memref<8x32xbf16, #tpu.memory_space<vmem>>, %arg9: memref<1x4x32xf32, #tpu.memory_space<vmem>>) attributes {dimension_semantics = [#tpu.dimension_semantics<parallel>], iteration_bounds = array<i64: 2>, scalar_prefetch = 0 : i64, scratch_operands = 0 : i64, tpu.core_type = #tpu.core_type<tc>, window_params = [{transform_indices = @transform_0, window_bounds = array<i64: 4, 32, 32>}, {transform_indices = @transform_1, window_bounds = array<i64: 4, 32, 32>}, {transform_indices = @transform_2, window_bounds = array<i64: 4, 16, 16>}, {transform_indices = @transform_3, window_bounds = array<i64: 4, 16, 8>}, {pipeline_mode = #tpu.pipeline_mode<synchronous>, transform_indices = @transform_4, window_bounds = array<i64: 32, 16>}, {pipeline_mode = #tpu.pipeline_mode<synchronous>, transform_indices = @transform_5, window_bounds = array<i64: 16, 32>}, {pipeline_mode = #tpu.pipeline_mode<synchronous>, transform_indices = @transform_6, window_bounds = array<i64: 32, 16>}, {pipeline_mode = #tpu.pipeline_mode<synchronous>, transform_indices = @transform_7, window_bounds = array<i64: 8, 32>}, {transform_indices = @transform_8, window_bounds = array<i64: 1, 4, 32>}]} {
    %c0 = arith.constant 0 : index
    %c0_0 = arith.constant 0 : index
    %c0_1 = arith.constant 0 : index
    %0 = vector.load %arg1[%c0, %c0_0, %c0_1] : memref<4x32x32xf32, #tpu.memory_space<vmem>>, vector<4x32x32xf32>
    %cst = arith.constant 0.000000e+00 : f32
    %1 = vector.broadcast %cst : f32 to vector<4x32x32xf32>
    %2 = arith.cmpf ogt, %0, %1 : vector<4x32x32xf32>
    %cst_2 = arith.constant 6.400000e+01 : f32
    %3 = vector.broadcast %cst_2 : f32 to vector<4x32x32xf32>
    %4 = arith.cmpf olt, %0, %3 : vector<4x32x32xf32>
    %5 = arith.andi %2, %4 : vector<4x32x32xi1>
    %6 = arith.extui %5 : vector<4x32x32xi1> to vector<4x32x32xi32>
    %7 = arith.sitofp %6 : vector<4x32x32xi32> to vector<4x32x32xf32>
    %cst_3 = arith.constant dense<0.000000e+00> : vector<32x32xf32>
    %8 = vector.multi_reduction <add>, %7, %cst_3 [0] : vector<4x32x32xf32> to vector<32x32xf32>
    %cst_4 = arith.constant dense<0.000000e+00> : vector<32xf32>
    %9 = vector.multi_reduction <add>, %8, %cst_4 [0] : vector<32x32xf32> to vector<32xf32>
    %10 = vector.shape_cast %9 : vector<32xf32> to vector<1x32xf32>
    %c0_5 = arith.constant 0 : index
    %c0_6 = arith.constant 0 : index
    %c0_7 = arith.constant 0 : index
    %11 = vector.load %arg2[%c0_5, %c0_6, %c0_7] : memref<4x32x32xf32, #tpu.memory_space<vmem>>, vector<4x32x32xf32>
    %12 = arith.subf %11, %0 : vector<4x32x32xf32>
    %13 = math.absf %12 : vector<4x32x32xf32>
    %cst_8 = arith.constant 1.000000e+00 : f32
    %14 = vector.broadcast %cst_8 : f32 to vector<4x32x32xf32>
    %15 = arith.cmpf olt, %13, %14 : vector<4x32x32xf32>
    %cst_9 = arith.constant 5.000000e-01 : f32
    %16 = vector.broadcast %cst_9 : f32 to vector<4x32x32xf32>
    %17 = arith.mulf %16, %12 : vector<4x32x32xf32>
    %18 = arith.mulf %17, %12 : vector<4x32x32xf32>
    %cst_10 = arith.constant 5.000000e-01 : f32
    %19 = vector.broadcast %cst_10 : f32 to vector<4x32x32xf32>
    %20 = arith.subf %13, %19 : vector<4x32x32xf32>
    %21 = arith.select %15, %18, %20 : vector<4x32x32xi1>, vector<4x32x32xf32>
    %22 = arith.mulf %21, %7 : vector<4x32x32xf32>
    %cst_11 = arith.constant dense<0.000000e+00> : vector<32x32xf32>
    %23 = vector.multi_reduction <add>, %22, %cst_11 [0] : vector<4x32x32xf32> to vector<32x32xf32>
    %cst_12 = arith.constant dense<0.000000e+00> : vector<32xf32>
    %24 = vector.multi_reduction <add>, %23, %cst_12 [0] : vector<32x32xf32> to vector<32xf32>
    %25 = vector.shape_cast %24 : vector<32xf32> to vector<1x32xf32>
    %c0_13 = arith.constant 0 : index
    %c0_14 = arith.constant 0 : index
    %c0_15 = arith.constant 0 : index
    %26 = vector.load %arg3[%c0_13, %c0_14, %c0_15] : memref<4x16x16xbf16, #tpu.memory_space<vmem>>, vector<4x16x16xbf16>
    %c0_16 = arith.constant 0 : index
    %c0_17 = arith.constant 0 : index
    %27 = vector.load %arg6[%c0_16, %c0_17] : memref<16x32xbf16, #tpu.memory_space<vmem>>, vector<16x32xbf16>
    %c0_18 = arith.constant 0 : index
    %c0_19 = arith.constant 0 : index
    %28 = vector.load %arg5[%c0_18, %c0_19] : memref<32x16xbf16, #tpu.memory_space<vmem>>, vector<32x16xbf16>
    %29 = vector.shape_cast %26 : vector<4x16x16xbf16> to vector<64x16xbf16>
    %cst_20 = arith.constant dense<0.000000e+00> : vector<64x32xf32>
    %30 = tpu.matmul %29, %27, %cst_20 {dimension_numbers = #tpu.dot_dimension_numbers<[1], [0], [0], [1], [0, 0, 1, 1], [], []>} : vector<64x16xbf16>, vector<16x32xbf16>, vector<64x32xf32> -> vector<64x32xf32>
    %31 = vector.shape_cast %30 : vector<64x32xf32> to vector<4x16x32xf32>
    %32 = arith.truncf %31 : vector<4x16x32xf32> to vector<4x16x32xbf16>
    %33 = vector.shape_cast %28 : vector<32x16xbf16> to vector<1x32x16xbf16>
    %34 = vector.broadcast %33 : vector<1x32x16xbf16> to vector<4x32x16xbf16>
    "tpu.trace_start"() <{level = 10 : i32, message = "bij,bjk->bik"}> : () -> ()
    %cst_21 = arith.constant dense<0.000000e+00> : vector<4x32x32xf32>
    %35 = tpu.matmul %34, %32, %cst_21 {dimension_numbers = #tpu.dot_dimension_numbers<[2], [1], [1], [2], [0, 0, 0, 1, 1, 2], [0], [0]>} : vector<4x32x16xbf16>, vector<4x16x32xbf16>, vector<4x32x32xf32> -> vector<4x32x32xf32>
    "tpu.trace_stop"() : () -> ()
    %36 = arith.subf %35, %0 : vector<4x32x32xf32>
    %37 = math.absf %36 : vector<4x32x32xf32>
    %cst_22 = arith.constant 1.000000e+00 : f32
    %38 = vector.broadcast %cst_22 : f32 to vector<4x32x32xf32>
    %39 = arith.cmpf olt, %37, %38 : vector<4x32x32xf32>
    %cst_23 = arith.constant 5.000000e-01 : f32
    %40 = vector.broadcast %cst_23 : f32 to vector<4x32x32xf32>
    %41 = arith.mulf %40, %36 : vector<4x32x32xf32>
    %42 = arith.mulf %41, %36 : vector<4x32x32xf32>
    %cst_24 = arith.constant 5.000000e-01 : f32
    %43 = vector.broadcast %cst_24 : f32 to vector<4x32x32xf32>
    %44 = arith.subf %37, %43 : vector<4x32x32xf32>
    %45 = arith.select %39, %42, %44 : vector<4x32x32xi1>, vector<4x32x32xf32>
    %46 = arith.mulf %45, %7 : vector<4x32x32xf32>
    %cst_25 = arith.constant dense<0.000000e+00> : vector<32x32xf32>
    %47 = vector.multi_reduction <add>, %46, %cst_25 [0] : vector<4x32x32xf32> to vector<32x32xf32>
    %cst_26 = arith.constant dense<0.000000e+00> : vector<32xf32>
    %48 = vector.multi_reduction <add>, %47, %cst_26 [0] : vector<32x32xf32> to vector<32xf32>
    %49 = vector.shape_cast %48 : vector<32xf32> to vector<1x32xf32>
    %c0_27 = arith.constant 0 : index
    %c0_28 = arith.constant 0 : index
    %c0_29 = arith.constant 0 : index
    %50 = vector.load %arg4[%c0_27, %c0_28, %c0_29] : memref<4x16x8xbf16, #tpu.memory_space<vmem>>, vector<4x16x8xbf16>
    %c0_30 = arith.constant 0 : index
    %c0_31 = arith.constant 0 : index
    %51 = vector.load %arg8[%c0_30, %c0_31] : memref<8x32xbf16, #tpu.memory_space<vmem>>, vector<8x32xbf16>
    %c0_32 = arith.constant 0 : index
    %c0_33 = arith.constant 0 : index
    %52 = vector.load %arg7[%c0_32, %c0_33] : memref<32x16xbf16, #tpu.memory_space<vmem>>, vector<32x16xbf16>
    %53 = vector.shape_cast %50 : vector<4x16x8xbf16> to vector<64x8xbf16>
    %cst_34 = arith.constant dense<0.000000e+00> : vector<64x32xf32>
    %54 = tpu.matmul %53, %51, %cst_34 {dimension_numbers = #tpu.dot_dimension_numbers<[1], [0], [0], [1], [0, 0, 1, 1], [], []>} : vector<64x8xbf16>, vector<8x32xbf16>, vector<64x32xf32> -> vector<64x32xf32>
    %55 = vector.shape_cast %54 : vector<64x32xf32> to vector<4x16x32xf32>
    %56 = arith.truncf %55 : vector<4x16x32xf32> to vector<4x16x32xbf16>
    %57 = vector.shape_cast %52 : vector<32x16xbf16> to vector<1x32x16xbf16>
    %58 = vector.broadcast %57 : vector<1x32x16xbf16> to vector<4x32x16xbf16>
    "tpu.trace_start"() <{level = 10 : i32, message = "bij,bjk->bik"}> : () -> ()
    %cst_35 = arith.constant dense<0.000000e+00> : vector<4x32x32xf32>
    %59 = tpu.matmul %58, %56, %cst_35 {dimension_numbers = #tpu.dot_dimension_numbers<[2], [1], [1], [2], [0, 0, 0, 1, 1, 2], [0], [0]>} : vector<4x32x16xbf16>, vector<4x16x32xbf16>, vector<4x32x32xf32> -> vector<4x32x32xf32>
    "tpu.trace_stop"() : () -> ()
    %60 = arith.subf %59, %0 : vector<4x32x32xf32>
    %61 = math.absf %60 : vector<4x32x32xf32>
    %cst_36 = arith.constant 1.000000e+00 : f32
    %62 = vector.broadcast %cst_36 : f32 to vector<4x32x32xf32>
    %63 = arith.cmpf olt, %61, %62 : vector<4x32x32xf32>
    %cst_37 = arith.constant 5.000000e-01 : f32
    %64 = vector.broadcast %cst_37 : f32 to vector<4x32x32xf32>
    %65 = arith.mulf %64, %60 : vector<4x32x32xf32>
    %66 = arith.mulf %65, %60 : vector<4x32x32xf32>
    %cst_38 = arith.constant 5.000000e-01 : f32
    %67 = vector.broadcast %cst_38 : f32 to vector<4x32x32xf32>
    %68 = arith.subf %61, %67 : vector<4x32x32xf32>
    %69 = arith.select %63, %66, %68 : vector<4x32x32xi1>, vector<4x32x32xf32>
    %70 = arith.mulf %69, %7 : vector<4x32x32xf32>
    %cst_39 = arith.constant dense<0.000000e+00> : vector<32x32xf32>
    %71 = vector.multi_reduction <add>, %70, %cst_39 [0] : vector<4x32x32xf32> to vector<32x32xf32>
    %cst_40 = arith.constant dense<0.000000e+00> : vector<32xf32>
    %72 = vector.multi_reduction <add>, %71, %cst_40 [0] : vector<32x32xf32> to vector<32xf32>
    %73 = vector.shape_cast %72 : vector<32xf32> to vector<1x32xf32>
    %74 = tpu.concatenate %25, %49, %73, %10 in 0 : vector<1x32xf32>, vector<1x32xf32>, vector<1x32xf32>, vector<1x32xf32> -> vector<4x32xf32>
    %75 = vector.shape_cast %74 : vector<4x32xf32> to vector<1x4x32xf32>
    %c0_41 = arith.constant 0 : index
    %c0_42 = arith.constant 0 : index
    %c0_43 = arith.constant 0 : index
    %76 = vector.load %arg9[%c0_41, %c0_42, %c0_43] : memref<1x4x32xf32, #tpu.memory_space<vmem>>, vector<1x4x32xf32>
    tpu.vector_store %arg9[%c0_41, %c0_42, %c0_43], %75 {strides = array<i32>} : memref<1x4x32xf32, #tpu.memory_space<vmem>>, vector<1x4x32xf32>,
    return
  }
  func.func @transform_0(%arg0: i32) -> (i32, i32, i32) {
    %c0_i32 = arith.constant 0 : i32
    %c0_i32_0 = arith.constant 0 : i32
    %c0_i32_1 = arith.constant 0 : i32
    return %arg0, %c0_i32, %c0_i32_0 : i32, i32, i32
  }
  func.func @transform_1(%arg0: i32) -> (i32, i32, i32) {
    %c0_i32 = arith.constant 0 : i32
    %c0_i32_0 = arith.constant 0 : i32
    %c0_i32_1 = arith.constant 0 : i32
    return %arg0, %c0_i32, %c0_i32_0 : i32, i32, i32
  }
  func.func @transform_2(%arg0: i32) -> (i32, i32, i32) {
    %c0_i32 = arith.constant 0 : i32
    %c0_i32_0 = arith.constant 0 : i32
    %c0_i32_1 = arith.constant 0 : i32
    return %arg0, %c0_i32, %c0_i32_0 : i32, i32, i32
  }
  func.func @transform_3(%arg0: i32) -> (i32, i32, i32) {
    %c0_i32 = arith.constant 0 : i32
    %c0_i32_0 = arith.constant 0 : i32
    %c0_i32_1 = arith.constant 0 : i32
    return %arg0, %c0_i32, %c0_i32_0 : i32, i32, i32
  }
  func.func @transform_4(%arg0: i32) -> (i32, i32) {
    %c0_i32 = arith.constant 0 : i32
    %c0_i32_0 = arith.constant 0 : i32
    %c0_i32_1 = arith.constant 0 : i32
    return %c0_i32, %c0_i32_0 : i32, i32
  }
  func.func @transform_5(%arg0: i32) -> (i32, i32) {
    %c0_i32 = arith.constant 0 : i32
    %c0_i32_0 = arith.constant 0 : i32
    %c0_i32_1 = arith.constant 0 : i32
    return %c0_i32, %c0_i32_0 : i32, i32
  }
  func.func @transform_6(%arg0: i32) -> (i32, i32) {
    %c0_i32 = arith.constant 0 : i32
    %c0_i32_0 = arith.constant 0 : i32
    %c0_i32_1 = arith.constant 0 : i32
    return %c0_i32, %c0_i32_0 : i32, i32
  }
  func.func @transform_7(%arg0: i32) -> (i32, i32) {
    %c0_i32 = arith.constant 0 : i32
    %c0_i32_0 = arith.constant 0 : i32
    %c0_i32_1 = arith.constant 0 : i32
    return %c0_i32, %c0_i32_0 : i32, i32
  }
  func.func @transform_8(%arg0: i32) -> (i32, i32, i32) {
    %c0_i32 = arith.constant 0 : i32
    %c0_i32_0 = arith.constant 0 : i32
    %c0_i32_1 = arith.constant 0 : i32
    return %arg0, %c0_i32, %c0_i32_0 : i32, i32, i32
  }
}

</mosaic_0001>

<llo_original>
// kernel: tpu_custom_call.1
$region0: #{tpu_custom_call.1}
  #allocation0 [shape = 'u32[]', space=smem, size = 0x4, offset = 0x4, fixed_abs, tag = 'smem constant byte address 0x4 - core index']
  #allocation1 [shape = 'u32[72,128]{1,0:T(1,128)}', space=vmem, size = 0x9000, scoped, tag = 'internal scratch']
  %s0 = inlined_call_operand.hbm [shape: f32[8,32,32], index: 0, kind: input, shape index: {}]
  %s1 = inlined_call_operand.hbm [shape: f32[8,32,32], index: 1, kind: input, shape index: {}]
  %s2 = inlined_call_operand.vmem [shape: bf16[8,16,16], index: 2, kind: input, shape index: {}]
  %s3 = inlined_call_operand.vmem [shape: bf16[8,16,8], index: 3, kind: input, shape index: {}]
  %s4 = inlined_call_operand.vmem [shape: bf16[32,16], index: 4, kind: input, shape index: {}]
  %s5 = inlined_call_operand.vmem [shape: bf16[16,32], index: 5, kind: input, shape index: {}]
  %s6 = inlined_call_operand.vmem [shape: bf16[32,16], index: 6, kind: input, shape index: {}]
  %s7 = inlined_call_operand.vmem [shape: bf16[8,32], index: 7, kind: input, shape index: {}]
  %s8 = inlined_call_operand.hbm [shape: f32[2,4,32], index: 8, kind: output, shape index: {}]
  %s9 = sld [smem:[#allocation0]]
  $region73: #{tpu_custom_call.1} parent=0
    _
  %s11 = ssub.s32 1, %s9
  %s12 = scalar_select 0, %s11, %s9
  $region1: #{tpu_custom_call.1} parent=0
    #allocation2 [shape = 'u8[131072]{0}', space=vmem, size = 0x20000, scoped, tag = 'input window, operand 0']
    #allocation3 [shape = 's32[2]{0}', space=sflag, size = 0x8, scoped, tag = 'scoped memory for tpu_custom_call.1']
    #allocation4 [shape = 's32[2]{0}', space=sflag, size = 0x8, scoped, tag = 'scoped memory for tpu_custom_call.1']
    #allocation5 [shape = 'u8[131072]{0}', space=vmem, size = 0x20000, scoped, tag = 'input window, operand 1']
    #allocation6 [shape = 's32[2]{0}', space=sflag, size = 0x8, scoped, tag = 'scoped memory for tpu_custom_call.1']
    #allocation7 [shape = 'u8[4096]{0}', space=vmem, size = 0x1000, scoped, tag = 'output window, operand 0']
    %13 = vsyncpa [#allocation3], 0
    %s14 = scalar_lea.sflag [#allocation3], 1
    %15 = vsyncpa %s14, 0
    %16 = vsyncpa [#allocation6], 0
    %s17 = scalar_lea.sflag [#allocation6], 1
    %18 = vsyncpa %s17, 0
    %19 = vsyncpa [#allocation4], 0
    %s20 = scalar_lea.sflag [#allocation4], 1
    %21 = vsyncpa %s20, 0
    loop: start=0, step=1, limit=4
    $region2: #{tpu_custom_call.1} parent=1 // loop_pre_header
      _
    $region3: #{tpu_custom_call.1} parent=1 // loop_header
      %s23 = sphi 0, %s27
      %p24 = scmp.ge.s32.totalorder %s23, 4
      %s33 = sphi 0, %s35
      %s36 = sphi 0, %s33
      %s37 = sphi 0, %s36
      %s53 = sphi 0, %s37
      %s59 = sphi 0, %s61
      %s62 = sphi 0, %s59
      %s63 = sphi 0, %s62
      %s79 = sphi 0, %s63
      %s85 = sphi 0, %s87
      %s88 = sphi 0, %s85
      %s89 = sphi 0, %s88
      %s105 = sphi 0, %s89
      %s111 = sphi 0, %s113
      %s114 = sphi 0, %s111
      %s115 = sphi 0, %s114
      %s131 = sphi 0, %s115
      %s135 = sphi 0, %s135
      %s137 = sphi 0, %s135
      %s138 = sphi 0, %s137
      %s152 = sphi 0, %s138
      %s156 = sphi 0, %s156
      %s158 = sphi 0, %s156
      %s159 = sphi 0, %s158
      %s173 = sphi 0, %s159
      %s177 = sphi 0, %s177
      %s179 = sphi 0, %s177
      %s180 = sphi 0, %s179
      %s194 = sphi 0, %s180
      %s198 = sphi 0, %s198
      %s200 = sphi 0, %s198
      %s201 = sphi 0, %s200
      %s215 = sphi 0, %s201
      %s221 = sphi 0, %s223
      %s224 = sphi 0, %s221
      %s225 = sphi 0, %s224
      %s241 = sphi 0, %s225
    $region4: #{tpu_custom_call.1} parent=1 // loop_header_branch
      %26 = sbr.rel (%p24) target = $region8
    $region5: #{tpu_custom_call.1} parent=1 // loop_body
      %s28 = ssub.s32 %s23, 1
      %s29 = ssub.s32 %s23, 2
      %s30 = sadd.s32 %s23, 1
      %s31 = ssub.s32 %s23, %s30
      %p32 = scmp.eq.s32.totalorder %s31, 0
      %s34 = sadd.s32 %s33, 1
      %s35 = scalar_select %p32, %s33, %s34
      %p38 = pneg %p32
      %p39 = scmp.eq.s32.totalorder %s23, 1
      %p40 = por %p38, %p39
      %p41 = scmp.ne.s32.totalorder %s33, %s36
      %p42 = scmp.eq.s32.totalorder %s23, 0
      %p43 = por %p41, %p42
      %p44 = scmp.ne.s32.totalorder %s33, %s36
      %p45 = scmp.eq.s32.totalorder %s28, 1
      %p46 = por %p44, %p45
      %p47 = scmp.ne.s32.totalorder %s36, %s37
      %p48 = scmp.eq.s32.totalorder %s28, 0
      %p49 = por %p47, %p48
      %p50 = scmp.ne.s32.totalorder %s36, %s37
      %p51 = scmp.eq.s32.totalorder %s29, 1
      %p52 = por %p50, %p51
      %p54 = scmp.ne.s32.totalorder %s37, %s53
      %p55 = scmp.eq.s32.totalorder %s29, 0
      %p56 = por %p54, %p55
      %s57 = ssub.s32 %s23, %s30
      %p58 = scmp.eq.s32.totalorder %s57, 0
      %s60 = sadd.s32 %s59, 1
      %s61 = scalar_select %p58, %s59, %s60
      %p64 = pneg %p58
      %p65 = scmp.eq.s32.totalorder %s23, 1
      %p66 = por %p64, %p65
      %p67 = scmp.ne.s32.totalorder %s59, %s62
      %p68 = scmp.eq.s32.totalorder %s23, 0
      %p69 = por %p67, %p68
      %p70 = scmp.ne.s32.totalorder %s59, %s62
      %p71 = scmp.eq.s32.totalorder %s28, 1
      %p72 = por %p70, %p71
      %p73 = scmp.ne.s32.totalorder %s62, %s63
      %p74 = scmp.eq.s32.totalorder %s28, 0
      %p75 = por %p73, %p74
      %p76 = scmp.ne.s32.totalorder %s62, %s63
      %p77 = scmp.eq.s32.totalorder %s29, 1
      %p78 = por %p76, %p77
      %p80 = scmp.ne.s32.totalorder %s63, %s79
      %p81 = scmp.eq.s32.totalorder %s29, 0
      %p82 = por %p80, %p81
      %s83 = ssub.s32 %s23, %s30
      %p84 = scmp.eq.s32.totalorder %s83, 0
      %s86 = sadd.s32 %s85, 1
      %s87 = scalar_select %p84, %s85, %s86
      %p90 = pneg %p84
      %p91 = scmp.eq.s32.totalorder %s23, 1
      %p92 = por %p90, %p91
      %p93 = scmp.ne.s32.totalorder %s85, %s88
      %p94 = scmp.eq.s32.totalorder %s23, 0
      %p95 = por %p93, %p94
      %p96 = scmp.ne.s32.totalorder %s85, %s88
      %p97 = scmp.eq.s32.totalorder %s28, 1
      %p98 = por %p96, %p97
      %p99 = scmp.ne.s32.totalorder %s88, %s89
      %p100 = scmp.eq.s32.totalorder %s28, 0
      %p101 = por %p99, %p100
      %p102 = scmp.ne.s32.totalorder %s88, %s89
      %p103 = scmp.eq.s32.totalorder %s29, 1
      %p104 = por %p102, %p103
      %p106 = scmp.ne.s32.totalorder %s89, %s105
      %p107 = scmp.eq.s32.totalorder %s29, 0
      %p108 = por %p106, %p107
      %s109 = ssub.s32 %s23, %s30
      %p110 = scmp.eq.s32.totalorder %s109, 0
      %s112 = sadd.s32 %s111, 1
      %s113 = scalar_select %p110, %s111, %s112
      %p116 = pneg %p110
      %p117 = scmp.eq.s32.totalorder %s23, 1
      %p118 = por %p116, %p117
      %p119 = scmp.ne.s32.totalorder %s111, %s114
      %p120 = scmp.eq.s32.totalorder %s23, 0
      %p121 = por %p119, %p120
      %p122 = scmp.ne.s32.totalorder %s111, %s114
      %p123 = scmp.eq.s32.totalorder %s28, 1
      %p124 = por %p122, %p123
      %p125 = scmp.ne.s32.totalorder %s114, %s115
      %p126 = scmp.eq.s32.totalorder %s28, 0
      %p127 = por %p125, %p126
      %p128 = scmp.ne.s32.totalorder %s114, %s115
      %p129 = scmp.eq.s32.totalorder %s29, 1
      %p130 = por %p128, %p129
      %p132 = scmp.ne.s32.totalorder %s115, %s131
      %p133 = scmp.eq.s32.totalorder %s29, 0
      %p134 = por %p132, %p133
      %s136 = sadd.s32 %s135, 1
      %p139 = scmp.eq.s32.totalorder %s23, 1
      %p140 = scmp.ne.s32.totalorder %s135, %s137
      %p141 = scmp.eq.s32.totalorder %s23, 0
      %p142 = por %p140, %p141
      %p143 = scmp.ne.s32.totalorder %s135, %s137
      %p144 = scmp.eq.s32.totalorder %s28, 1
      %p145 = por %p143, %p144
      %p146 = scmp.ne.s32.totalorder %s137, %s138
      %p147 = scmp.eq.s32.totalorder %s28, 0
      %p148 = por %p146, %p147
      %p149 = scmp.ne.s32.totalorder %s137, %s138
      %p150 = scmp.eq.s32.totalorder %s29, 1
      %p151 = por %p149, %p150
      %p153 = scmp.ne.s32.totalorder %s138, %s152
      %p154 = scmp.eq.s32.totalorder %s29, 0
      %p155 = por %p153, %p154
      %s157 = sadd.s32 %s156, 1
      %p160 = scmp.eq.s32.totalorder %s23, 1
      %p161 = scmp.ne.s32.totalorder %s156, %s158
      %p162 = scmp.eq.s32.totalorder %s23, 0
      %p163 = por %p161, %p162
      %p164 = scmp.ne.s32.totalorder %s156, %s158
      %p165 = scmp.eq.s32.totalorder %s28, 1
      %p166 = por %p164, %p165
      %p167 = scmp.ne.s32.totalorder %s158, %s159
      %p168 = scmp.eq.s32.totalorder %s28, 0
      %p169 = por %p167, %p168
      %p170 = scmp.ne.s32.totalorder %s158, %s159
      %p171 = scmp.eq.s32.totalorder %s29, 1
      %p172 = por %p170, %p171
      %p174 = scmp.ne.s32.totalorder %s159, %s173
      %p175 = scmp.eq.s32.totalorder %s29, 0
      %p176 = por %p174, %p175
      %s178 = sadd.s32 %s177, 1
      %p181 = scmp.eq.s32.totalorder %s23, 1
      %p182 = scmp.ne.s32.totalorder %s177, %s179
      %p183 = scmp.eq.s32.totalorder %s23, 0
      %p184 = por %p182, %p183
      %p185 = scmp.ne.s32.totalorder %s177, %s179
      %p186 = scmp.eq.s32.totalorder %s28, 1
      %p187 = por %p185, %p186
      %p188 = scmp.ne.s32.totalorder %s179, %s180
      %p189 = scmp.eq.s32.totalorder %s28, 0
      %p190 = por %p188, %p189
      %p191 = scmp.ne.s32.totalorder %s179, %s180
      %p192 = scmp.eq.s32.totalorder %s29, 1
      %p193 = por %p191, %p192
      %p195 = scmp.ne.s32.totalorder %s180, %s194
      %p196 = scmp.eq.s32.totalorder %s29, 0
      %p197 = por %p195, %p196
      %s199 = sadd.s32 %s198, 1
      %p202 = scmp.eq.s32.totalorder %s23, 1
      %p203 = scmp.ne.s32.totalorder %s198, %s200
      %p204 = scmp.eq.s32.totalorder %s23, 0
      %p205 = por %p203, %p204
      %p206 = scmp.ne.s32.totalorder %s198, %s200
      %p207 = scmp.eq.s32.totalorder %s28, 1
      %p208 = por %p206, %p207
      %p209 = scmp.ne.s32.totalorder %s200, %s201
      %p210 = scmp.eq.s32.totalorder %s28, 0
      %p211 = por %p209, %p210
      %p212 = scmp.ne.s32.totalorder %s200, %s201
      %p213 = scmp.eq.s32.totalorder %s29, 1
      %p214 = por %p212, %p213
      %p216 = scmp.ne.s32.totalorder %s201, %s215
      %p217 = scmp.eq.s32.totalorder %s29, 0
      %p218 = por %p216, %p217
      %s219 = ssub.s32 %s23, %s30
      %p220 = scmp.eq.s32.totalorder %s219, 0
      %s222 = sadd.s32 %s221, 1
      %s223 = scalar_select %p220, %s221, %s222
      %p226 = pneg %p220
      %p227 = scmp.eq.s32.totalorder %s23, 1
      %p228 = por %p226, %p227
      %p229 = scmp.ne.s32.totalorder %s221, %s224
      %p230 = scmp.eq.s32.totalorder %s23, 0
      %p231 = por %p229, %p230
      %p232 = scmp.ne.s32.totalorder %s221, %s224
      %p233 = scmp.eq.s32.totalorder %s28, 1
      %p234 = por %p232, %p233
      %p235 = scmp.ne.s32.totalorder %s224, %s225
      %p236 = scmp.eq.s32.totalorder %s28, 0
      %p237 = por %p235, %p236
      %p238 = scmp.ne.s32.totalorder %s224, %s225
      %p239 = scmp.eq.s32.totalorder %s29, 1
      %p240 = por %p238, %p239
      %p242 = scmp.ne.s32.totalorder %s225, %s241
      %p243 = scmp.eq.s32.totalorder %s29, 0
      %p244 = por %p242, %p243
      %p245 = scmp.le.s32.totalorder 1, %s23
      %p246 = scmp.lt.s32.totalorder %s23, 3
      %p247 = pnand %p245, %p246
      %p248 = pneg %p247
      // Predicated region
      $region9: #{tpu_custom_call.1} parent=5 // pred_check
        _
      $region10: #{tpu_custom_call.1} parent=5 // pred_check_branch
        %250 = sbr.rel (%p247) target = $region12
      $region11: #{tpu_custom_call.1} parent=5 // pred_region
        %s251 = ssub.s32 %s23, 1
        // Predicated region
        $region13: #{tpu_custom_call.1} parent=11 // pred_check
          %p252 = pneg %p148
        $region14: #{tpu_custom_call.1} parent=11 // pred_check_branch
          %254 = sbr.rel (%p252) target = $region16
        $region15: #{tpu_custom_call.1} parent=11 // pred_region
          _
        $region16: #{tpu_custom_call.1} parent=11 // pred_fallthru
          _
        // Predicated region
        $region17: #{tpu_custom_call.1} parent=11 // pred_check
          %p255 = pneg %p169
        $region18: #{tpu_custom_call.1} parent=11 // pred_check_branch
          %257 = sbr.rel (%p255) target = $region20
        $region19: #{tpu_custom_call.1} parent=11 // pred_region
          _
        $region20: #{tpu_custom_call.1} parent=11 // pred_fallthru
          _
        // Predicated region
        $region21: #{tpu_custom_call.1} parent=11 // pred_check
          %p258 = pneg %p190
        $region22: #{tpu_custom_call.1} parent=11 // pred_check_branch
          %260 = sbr.rel (%p258) target = $region24
        $region23: #{tpu_custom_call.1} parent=11 // pred_region
          _
        $region24: #{tpu_custom_call.1} parent=11 // pred_fallthru
          _
        // Predicated region
        $region25: #{tpu_custom_call.1} parent=11 // pred_check
          %p261 = pneg %p211
        $region26: #{tpu_custom_call.1} parent=11 // pred_check_branch
          %263 = sbr.rel (%p261) target = $region28
        $region27: #{tpu_custom_call.1} parent=11 // pred_region
          _
        $region28: #{tpu_custom_call.1} parent=11 // pred_fallthru
          _
      $region12: #{tpu_custom_call.1} parent=5 // pred_fallthru
        _
      %p264 = scmp.lt.s32.totalorder %s23, 2
      // Predicated region
      $region29: #{tpu_custom_call.1} parent=5 // pred_check
        %p265 = pneg %p264
      $region30: #{tpu_custom_call.1} parent=5 // pred_check_branch
        %267 = sbr.rel (%p265) target = $region32
      $region31: #{tpu_custom_call.1} parent=5 // pred_region
        // Predicated region
        $region33: #{tpu_custom_call.1} parent=31 // pred_check
          %p268 = pneg %p43
        $region34: #{tpu_custom_call.1} parent=31 // pred_check_branch
          %270 = sbr.rel (%p268) target = $region36
        $region35: #{tpu_custom_call.1} parent=31 // pred_region
          %s271 = sand.u32 %s33, 1
          %s272 = scalar_lea.sflag [#allocation3], %s271
          %s273 = sand.u32 %s33, 1
          %s274 = smul.addr %s273, 128
          %s275 = scalar_lea.vmem [#allocation2], %s274
          %s276 = smul.u32 4, %s23
          %278 = vsyncadd %s272, 0
          %s279 = smul.addr %s276, 4
          %s280 = smul.addr %s279, 8
          %s281 = scalar_lea.hbm %s0, %s280
          %s282 = sshll.u32 %s281, 4
          %s283 = int_to_ptr.hbm [resolvable:$true] %s282
          %s284 = sshll.u32 %s275, 4
          %s285 = int_to_ptr.vmem [resolvable:$true] %s284
          %290 = dma.hbm_to_vmem [thread:$0]  %s283, 2048, %s285, %s272, 128, 128, 8
        $region36: #{tpu_custom_call.1} parent=31 // pred_fallthru
          _
        // Predicated region
        $region37: #{tpu_custom_call.1} parent=31 // pred_check
          %p291 = pneg %p69
        $region38: #{tpu_custom_call.1} parent=31 // pred_check_branch
          %293 = sbr.rel (%p291) target = $region40
        $region39: #{tpu_custom_call.1} parent=31 // pred_region
          %s294 = sand.u32 %s59, 1
          %s295 = scalar_lea.sflag [#allocation6], %s294
          %s296 = sand.u32 %s59, 1
          %s297 = smul.addr %s296, 128
          %s298 = scalar_lea.vmem [#allocation5], %s297
          %s299 = smul.u32 4, %s23
          %301 = vsyncadd %s295, 0
          %s302 = smul.addr %s299, 4
          %s303 = smul.addr %s302, 8
          %s304 = scalar_lea.hbm %s1, %s303
          %s305 = sshll.u32 %s304, 4
          %s306 = int_to_ptr.hbm [resolvable:$true] %s305
          %s307 = sshll.u32 %s298, 4
          %s308 = int_to_ptr.vmem [resolvable:$true] %s307
          %313 = dma.hbm_to_vmem [thread:$0]  %s306, 2048, %s308, %s295, 128, 128, 8
        $region40: #{tpu_custom_call.1} parent=31 // pred_fallthru
          _
        // Predicated region
        $region41: #{tpu_custom_call.1} parent=31 // pred_check
          %p314 = pneg %p95
        $region42: #{tpu_custom_call.1} parent=31 // pred_check_branch
          %316 = sbr.rel (%p314) target = $region44
        $region43: #{tpu_custom_call.1} parent=31 // pred_region
          %s317 = smul.u32 4, %s23
          %p318 = scmp.lt.s32.totalorder %s317, 7
          %s319 = scalar_select %p318, %s317, 7
          %s320 = smul.addr %s319, 2
          %s321 = smul.addr %s320, 4
          %s322 = scalar_lea.vmem %s2, %s321
          %s323 = smul.u32 4, %s23
        $region44: #{tpu_custom_call.1} parent=31 // pred_fallthru
          _
        // Predicated region
        $region45: #{tpu_custom_call.1} parent=31 // pred_check
          %p324 = pneg %p121
        $region46: #{tpu_custom_call.1} parent=31 // pred_check_branch
          %326 = sbr.rel (%p324) target = $region48
        $region47: #{tpu_custom_call.1} parent=31 // pred_region
          %s327 = smul.u32 4, %s23
          %p328 = scmp.lt.s32.totalorder %s327, 7
          %s329 = scalar_select %p328, %s327, 7
          %s330 = smul.addr %s329, 2
          %s331 = smul.addr %s330, 4
          %s332 = scalar_lea.vmem %s3, %s331
          %s333 = smul.u32 4, %s23
        $region48: #{tpu_custom_call.1} parent=31 // pred_fallthru
          _
      $region32: #{tpu_custom_call.1} parent=5 // pred_fallthru
        _
      %p334 = scmp.le.s32.totalorder 1, %s23
      %p335 = scmp.lt.s32.totalorder %s23, 3
      %p336 = pnand %p334, %p335
      %p337 = pneg %p336
      // Predicated region
      $region49: #{tpu_custom_call.1} parent=5 // pred_check
        _
      $region50: #{tpu_custom_call.1} parent=5 // pred_check_branch
        %339 = sbr.rel (%p336) target = $region52
      $region51: #{tpu_custom_call.1} parent=5 // pred_region
        %s340 = ssub.s32 %s23, 1
        %s341 = sand.u32 %s36, 1
        %s342 = scalar_lea.sflag [#allocation3], %s341
        %s343 = sand.u32 %s36, 1
        %s344 = smul.addr %s343, 128
        %s345 = scalar_lea.vmem [#allocation2], %s344
        // Predicated region
        $region53: #{tpu_custom_call.1} parent=51 // pred_check
          %p346 = pneg %p49
        $region54: #{tpu_custom_call.1} parent=51 // pred_check_branch
          %348 = sbr.rel (%p346) target = $region56
        $region55: #{tpu_custom_call.1} parent=51 // pred_region
          %350 = dma.done %s342, 2048
        $region56: #{tpu_custom_call.1} parent=51 // pred_fallthru
          _
        %s351 = sand.u32 %s62, 1
        %s352 = scalar_lea.sflag [#allocation6], %s351
        %s353 = sand.u32 %s62, 1
        %s354 = smul.addr %s353, 128
        %s355 = scalar_lea.vmem [#allocation5], %s354
        // Predicated region
        $region57: #{tpu_custom_call.1} parent=51 // pred_check
          %p356 = pneg %p75
        $region58: #{tpu_custom_call.1} parent=51 // pred_check_branch
          %358 = sbr.rel (%p356) target = $region60
        $region59: #{tpu_custom_call.1} parent=51 // pred_region
          %360 = dma.done %s352, 2048
        $region60: #{tpu_custom_call.1} parent=51 // pred_fallthru
          _
        %s361 = sand.u32 %s36, 1
        %s362 = scalar_lea.sflag [#allocation3], %s361
        %s363 = sand.u32 %s36, 1
        %s364 = smul.addr %s363, 128
        %s365 = scalar_lea.vmem [#allocation2], %s364
        %p366 = pneg %p49
        %p367 = pneg %p46
        %s368 = sand.u32 %s62, 1
        %s369 = scalar_lea.sflag [#allocation6], %s368
        %s370 = sand.u32 %s62, 1
        %s371 = smul.addr %s370, 128
        %s372 = scalar_lea.vmem [#allocation5], %s371
        %p373 = pneg %p75
        %p374 = pneg %p72
        %s375 = smul.u32 4, %s28
        %p376 = scmp.lt.s32.totalorder %s375, 7
        %s377 = scalar_select %p376, %s375, 7
        %s378 = smul.addr %s377, 2
        %s379 = smul.addr %s378, 4
        %s380 = scalar_lea.vmem %s2, %s379
        %p381 = pneg %p101
        %p382 = pneg %p98
        %s383 = smul.u32 4, %s28
        %p384 = scmp.lt.s32.totalorder %s383, 7
        %s385 = scalar_select %p384, %s383, 7
        %s386 = smul.addr %s385, 2
        %s387 = smul.addr %s386, 4
        %s388 = scalar_lea.vmem %s3, %s387
        %p389 = pneg %p127
        %p390 = pneg %p124
        %p391 = pneg %p148
        %p392 = pneg %p145
        %p393 = pneg %p169
        %p394 = pneg %p166
        %p395 = pneg %p190
        %p396 = pneg %p187
        %p397 = pneg %p211
        %p398 = pneg %p208
        %p399 = pneg %p237
        %p400 = pneg %p234
        %s401 = sand.u32 %s224, 1
        %s402 = scalar_lea.sflag [#allocation4], %s401
        %s403 = sand.u32 %s224, 1
        %s404 = smul.addr %s403, 4
        %s405 = scalar_lea.vmem [#allocation7], %s404
        %s406 = smul.u32 4, %s28
        %s407 = smul.u32 4, %s28
        %s408 = smul.u32 4, %s28
        %p409 = scmp.lt.s32.totalorder %s408, 7
        %s410 = scalar_select %p409, %s408, 7
        %s411 = smul.addr %s410, 2
        %s412 = smul.addr %s411, 4
        %s413 = scalar_lea.vmem %s2, %s412
        %s414 = smul.u32 4, %s28
        %s415 = smul.u32 4, %s28
        %p416 = scmp.lt.s32.totalorder %s415, 7
        %s417 = scalar_select %p416, %s415, 7
        %s418 = smul.addr %s417, 2
        %s419 = smul.addr %s418, 4
        %s420 = scalar_lea.vmem %s3, %s419
        %s421 = smul.u32 4, %s28
        %v423 = vld [vmem:[%s345] sm:$0xff]
        %v424 = vld [vmem:[%s345 + $0x8] sm:$0xff]
        %v425 = vld [vmem:[%s345 + $0x10] sm:$0xff]
        %v426 = vld [vmem:[%s345 + $0x18] sm:$0xff]
        %v427 = vld [vmem:[%s345 + $0x20] sm:$0xff]
        %v428 = vld [vmem:[%s345 + $0x28] sm:$0xff]
        %v429 = vld [vmem:[%s345 + $0x30] sm:$0xff]
        %v430 = vld [vmem:[%s345 + $0x38] sm:$0xff]
        %v431 = vld [vmem:[%s345 + $0x40] sm:$0xff]
        %v432 = vld [vmem:[%s345 + $0x48] sm:$0xff]
        %v433 = vld [vmem:[%s345 + $0x50] sm:$0xff]
        %v434 = vld [vmem:[%s345 + $0x58] sm:$0xff]
        %v435 = vld [vmem:[%s345 + $0x60] sm:$0xff]
        %v436 = vld [vmem:[%s345 + $0x68] sm:$0xff]
        %v437 = vld [vmem:[%s345 + $0x70] sm:$0xff]
        %v438 = vld [vmem:[%s345 + $0x78] sm:$0xff]
        %vm439 = vcmp.gt.f32.partialorder %v423, 0.0
        %vm440 = vcmp.gt.f32.partialorder %v424, 0.0
        %vm441 = vcmp.gt.f32.partialorder %v425, 0.0
        %vm442 = vcmp.gt.f32.partialorder %v426, 0.0
        %vm443 = vcmp.gt.f32.partialorder %v427, 0.0
        %vm444 = vcmp.gt.f32.partialorder %v428, 0.0
        %vm445 = vcmp.gt.f32.partialorder %v429, 0.0
        %vm446 = vcmp.gt.f32.partialorder %v430, 0.0
        %vm447 = vcmp.gt.f32.partialorder %v431, 0.0
        %vm448 = vcmp.gt.f32.partialorder %v432, 0.0
        %vm449 = vcmp.gt.f32.partialorder %v433, 0.0
        %vm450 = vcmp.gt.f32.partialorder %v434, 0.0
        %vm451 = vcmp.gt.f32.partialorder %v435, 0.0
        %vm452 = vcmp.gt.f32.partialorder %v436, 0.0
        %vm453 = vcmp.gt.f32.partialorder %v437, 0.0
        %vm454 = vcmp.gt.f32.partialorder %v438, 0.0
        %vm455 = vcmp.lt.f32.partialorder %v423, 64.0
        %vm456 = vcmp.lt.f32.partialorder %v424, 64.0
        %vm457 = vcmp.lt.f32.partialorder %v425, 64.0
        %vm458 = vcmp.lt.f32.partialorder %v426, 64.0
        %vm459 = vcmp.lt.f32.partialorder %v427, 64.0
        %vm460 = vcmp.lt.f32.partialorder %v428, 64.0
        %vm461 = vcmp.lt.f32.partialorder %v429, 64.0
        %vm462 = vcmp.lt.f32.partialorder %v430, 64.0
        %vm463 = vcmp.lt.f32.partialorder %v431, 64.0
        %vm464 = vcmp.lt.f32.partialorder %v432, 64.0
        %vm465 = vcmp.lt.f32.partialorder %v433, 64.0
        %vm466 = vcmp.lt.f32.partialorder %v434, 64.0
        %vm467 = vcmp.lt.f32.partialorder %v435, 64.0
        %vm468 = vcmp.lt.f32.partialorder %v436, 64.0
        %vm469 = vcmp.lt.f32.partialorder %v437, 64.0
        %vm470 = vcmp.lt.f32.partialorder %v438, 64.0
        %vm471 = vmand %vm439, %vm455
        %vm472 = vmand %vm440, %vm456
        %vm473 = vmand %vm441, %vm457
        %vm474 = vmand %vm442, %vm458
        %vm475 = vmand %vm443, %vm459
        %vm476 = vmand %vm444, %vm460
        %vm477 = vmand %vm445, %vm461
        %vm478 = vmand %vm446, %vm462
        %vm479 = vmand %vm447, %vm463
        %vm480 = vmand %vm448, %vm464
        %vm481 = vmand %vm449, %vm465
        %vm482 = vmand %vm450, %vm466
        %vm483 = vmand %vm451, %vm467
        %vm484 = vmand %vm452, %vm468
        %vm485 = vmand %vm453, %vm469
        %vm486 = vmand %vm454, %vm470
        %v487 = vsel %vm471, 1, 0
        %v488 = vsel %vm472, 1, 0
        %v489 = vsel %vm473, 1, 0
        %v490 = vsel %vm474, 1, 0
        %v491 = vsel %vm475, 1, 0
        %v492 = vsel %vm476, 1, 0
        %v493 = vsel %vm477, 1, 0
        %v494 = vsel %vm478, 1, 0
        %v495 = vsel %vm479, 1, 0
        %v496 = vsel %vm480, 1, 0
        %v497 = vsel %vm481, 1, 0
        %v498 = vsel %vm482, 1, 0
        %v499 = vsel %vm483, 1, 0
        %v500 = vsel %vm484, 1, 0
        %v501 = vsel %vm485, 1, 0
        %v502 = vsel %vm486, 1, 0
        %v503 = vcvt.s32.f32 %v487
        %v504 = vcvt.s32.f32 %v488
        %v505 = vcvt.s32.f32 %v489
        %v506 = vcvt.s32.f32 %v490
        %v507 = vcvt.s32.f32 %v491
        %v508 = vcvt.s32.f32 %v492
        %v509 = vcvt.s32.f32 %v493
        %v510 = vcvt.s32.f32 %v494
        %v511 = vcvt.s32.f32 %v495
        %v512 = vcvt.s32.f32 %v496
        %v513 = vcvt.s32.f32 %v497
        %v514 = vcvt.s32.f32 %v498
        %v515 = vcvt.s32.f32 %v499
        %v516 = vcvt.s32.f32 %v500
        %v517 = vcvt.s32.f32 %v501
        %v518 = vcvt.s32.f32 %v502
        %vm519 = vcmask 261120
        %v520 = vsel %vm519, %v503, 0.0
        %v521 = vsel %vm519, %v507, 0.0
        %v522 = vadd.f32 %v520, %v521
        %v523 = vsel %vm519, %v511, 0.0
        %v524 = vadd.f32 %v522, %v523
        %v525 = vsel %vm519, %v515, 0.0
        %v526 = vadd.f32 %v524, %v525
        %v527 = vsel %vm519, %v504, 0.0
        %v528 = vsel %vm519, %v508, 0.0
        %v529 = vadd.f32 %v527, %v528
        %v530 = vsel %vm519, %v512, 0.0
        %v531 = vadd.f32 %v529, %v530
        %v532 = vsel %vm519, %v516, 0.0
        %v533 = vadd.f32 %v531, %v532
        %v534 = vsel %vm519, %v505, 0.0
        %v535 = vsel %vm519, %v509, 0.0
        %v536 = vadd.f32 %v534, %v535
        %v537 = vsel %vm519, %v513, 0.0
        %v538 = vadd.f32 %v536, %v537
        %v539 = vsel %vm519, %v517, 0.0
        %v540 = vadd.f32 %v538, %v539
        %v541 = vsel %vm519, %v506, 0.0
        %v542 = vsel %vm519, %v510, 0.0
        %v543 = vadd.f32 %v541, %v542
        %v544 = vsel %vm519, %v514, 0.0
        %v545 = vadd.f32 %v543, %v544
        %v546 = vsel %vm519, %v518, 0.0
        %v547 = vadd.f32 %v545, %v546
        %v548 = vsel %vm519, %v526, 0.0
        %v549 = vsel %vm519, %v533, 0.0
        %v550 = vadd.f32 %v548, %v549
        %v551 = vsel %vm519, %v540, 0.0
        %v552 = vadd.f32 %v550, %v551
        %v553 = vsel %vm519, %v547, 0.0
        %v554 = vadd.f32 %v552, %v553
        %v555 = vrot.slane %v554, 4
        %v556 = vadd.f32 %v554, %v555
        %v557 = vrot.slane %v556, 2
        %v558 = vadd.f32 %v556, %v557
        %v559 = vrot.slane %v558, 1
        %v560 = vadd.f32 %v558, %v559
        %v561 = vld [vmem:[%s355] sm:$0xff]
        %v562 = vld [vmem:[%s355 + $0x8] sm:$0xff]
        %v563 = vld [vmem:[%s355 + $0x10] sm:$0xff]
        %v564 = vld [vmem:[%s355 + $0x18] sm:$0xff]
        %v565 = vld [vmem:[%s355 + $0x20] sm:$0xff]
        %v566 = vld [vmem:[%s355 + $0x28] sm:$0xff]
        %v567 = vld [vmem:[%s355 + $0x30] sm:$0xff]
        %v568 = vld [vmem:[%s355 + $0x38] sm:$0xff]
        %v569 = vld [vmem:[%s355 + $0x40] sm:$0xff]
        %v570 = vld [vmem:[%s355 + $0x48] sm:$0xff]
        %v571 = vld [vmem:[%s355 + $0x50] sm:$0xff]
        %v572 = vld [vmem:[%s355 + $0x58] sm:$0xff]
        %v573 = vld [vmem:[%s355 + $0x60] sm:$0xff]
        %v574 = vld [vmem:[%s355 + $0x68] sm:$0xff]
        %v575 = vld [vmem:[%s355 + $0x70] sm:$0xff]
        %v576 = vld [vmem:[%s355 + $0x78] sm:$0xff]
        %v577 = vsub.f32 %v561, %v423
        %v578 = vsub.f32 %v562, %v424
        %v579 = vsub.f32 %v563, %v425
        %v580 = vsub.f32 %v564, %v426
        %v581 = vsub.f32 %v565, %v427
        %v582 = vsub.f32 %v566, %v428
        %v583 = vsub.f32 %v567, %v429
        %v584 = vsub.f32 %v568, %v430
        %v585 = vsub.f32 %v569, %v431
        %v586 = vsub.f32 %v570, %v432
        %v587 = vsub.f32 %v571, %v433
        %v588 = vsub.f32 %v572, %v434
        %v589 = vsub.f32 %v573, %v435
        %v590 = vsub.f32 %v574, %v436
        %v591 = vsub.f32 %v575, %v437
        %v592 = vsub.f32 %v576, %v438
        %v593 = vand.u32 2147483647, %v577
        %v594 = vand.u32 2147483647, %v578
        %v595 = vand.u32 2147483647, %v579
        %v596 = vand.u32 2147483647, %v580
        %v597 = vand.u32 2147483647, %v581
        %v598 = vand.u32 2147483647, %v582
        %v599 = vand.u32 2147483647, %v583
        %v600 = vand.u32 2147483647, %v584
        %v601 = vand.u32 2147483647, %v585
        %v602 = vand.u32 2147483647, %v586
        %v603 = vand.u32 2147483647, %v587
        %v604 = vand.u32 2147483647, %v588
        %v605 = vand.u32 2147483647, %v589
        %v606 = vand.u32 2147483647, %v590
        %v607 = vand.u32 2147483647, %v591
        %v608 = vand.u32 2147483647, %v592
        %vm609 = vcmp.lt.f32.partialorder %v593, 1.0
        %vm610 = vcmp.lt.f32.partialorder %v594, 1.0
        %vm611 = vcmp.lt.f32.partialorder %v595, 1.0
        %vm612 = vcmp.lt.f32.partialorder %v596, 1.0
        %vm613 = vcmp.lt.f32.partialorder %v597, 1.0
        %vm614 = vcmp.lt.f32.partialorder %v598, 1.0
        %vm615 = vcmp.lt.f32.partialorder %v599, 1.0
        %vm616 = vcmp.lt.f32.partialorder %v600, 1.0
        %vm617 = vcmp.lt.f32.partialorder %v601, 1.0
        %vm618 = vcmp.lt.f32.partialorder %v602, 1.0
        %vm619 = vcmp.lt.f32.partialorder %v603, 1.0
        %vm620 = vcmp.lt.f32.partialorder %v604, 1.0
        %vm621 = vcmp.lt.f32.partialorder %v605, 1.0
        %vm622 = vcmp.lt.f32.partialorder %v606, 1.0
        %vm623 = vcmp.lt.f32.partialorder %v607, 1.0
        %vm624 = vcmp.lt.f32.partialorder %v608, 1.0
        %v625 = vmul.f32 %v577, 0.5
        %v626 = vmul.f32 %v578, 0.5
        %v627 = vmul.f32 %v579, 0.5
        %v628 = vmul.f32 %v580, 0.5
        %v629 = vmul.f32 %v581, 0.5
        %v630 = vmul.f32 %v582, 0.5
        %v631 = vmul.f32 %v583, 0.5
        %v632 = vmul.f32 %v584, 0.5
        %v633 = vmul.f32 %v585, 0.5
        %v634 = vmul.f32 %v586, 0.5
        %v635 = vmul.f32 %v587, 0.5
        %v636 = vmul.f32 %v588, 0.5
        %v637 = vmul.f32 %v589, 0.5
        %v638 = vmul.f32 %v590, 0.5
        %v639 = vmul.f32 %v591, 0.5
        %v640 = vmul.f32 %v592, 0.5
        %v641 = vmul.f32 %v625, %v577
        %v642 = vmul.f32 %v626, %v578
        %v643 = vmul.f32 %v627, %v579
        %v644 = vmul.f32 %v628, %v580
        %v645 = vmul.f32 %v629, %v581
        %v646 = vmul.f32 %v630, %v582
        %v647 = vmul.f32 %v631, %v583
        %v648 = vmul.f32 %v632, %v584
        %v649 = vmul.f32 %v633, %v585
        %v650 = vmul.f32 %v634, %v586
        %v651 = vmul.f32 %v635, %v587
        %v652 = vmul.f32 %v636, %v588
        %v653 = vmul.f32 %v637, %v589
        %v654 = vmul.f32 %v638, %v590
        %v655 = vmul.f32 %v639, %v591
        %v656 = vmul.f32 %v640, %v592
        %v657 = vsub.f32 %v593, 0.5
        %v658 = vsub.f32 %v594, 0.5
        %v659 = vsub.f32 %v595, 0.5
        %v660 = vsub.f32 %v596, 0.5
        %v661 = vsub.f32 %v597, 0.5
        %v662 = vsub.f32 %v598, 0.5
        %v663 = vsub.f32 %v599, 0.5
        %v664 = vsub.f32 %v600, 0.5
        %v665 = vsub.f32 %v601, 0.5
        %v666 = vsub.f32 %v602, 0.5
        %v667 = vsub.f32 %v603, 0.5
        %v668 = vsub.f32 %v604, 0.5
        %v669 = vsub.f32 %v605, 0.5
        %v670 = vsub.f32 %v606, 0.5
        %v671 = vsub.f32 %v607, 0.5
        %v672 = vsub.f32 %v608, 0.5
        %v673 = vsel %vm609, %v641, %v657
        %v674 = vsel %vm610, %v642, %v658
        %v675 = vsel %vm611, %v643, %v659
        %v676 = vsel %vm612, %v644, %v660
        %v677 = vsel %vm613, %v645, %v661
        %v678 = vsel %vm614, %v646, %v662
        %v679 = vsel %vm615, %v647, %v663
        %v680 = vsel %vm616, %v648, %v664
        %v681 = vsel %vm617, %v649, %v665
        %v682 = vsel %vm618, %v650, %v666
        %v683 = vsel %vm619, %v651, %v667
        %v684 = vsel %vm620, %v652, %v668
        %v685 = vsel %vm621, %v653, %v669
        %v686 = vsel %vm622, %v654, %v670
        %v687 = vsel %vm623, %v655, %v671
        %v688 = vsel %vm624, %v656, %v672
        %v689 = vmul.f32 %v673, %v503
        %v690 = vmul.f32 %v674, %v504
        %v691 = vmul.f32 %v675, %v505
        %v692 = vmul.f32 %v676, %v506
        %v693 = vmul.f32 %v677, %v507
        %v694 = vmul.f32 %v678, %v508
        %v695 = vmul.f32 %v679, %v509
        %v696 = vmul.f32 %v680, %v510
        %v697 = vmul.f32 %v681, %v511
        %v698 = vmul.f32 %v682, %v512
        %v699 = vmul.f32 %v683, %v513
        %v700 = vmul.f32 %v684, %v514
        %v701 = vmul.f32 %v685, %v515
        %v702 = vmul.f32 %v686, %v516
        %v703 = vmul.f32 %v687, %v517
        %v704 = vmul.f32 %v688, %v518
        %v705 = vsel %vm519, %v689, 0.0
        %v706 = vsel %vm519, %v693, 0.0
        %v707 = vadd.f32 %v705, %v706
        %v708 = vsel %vm519, %v697, 0.0
        %v709 = vadd.f32 %v707, %v708
        %v710 = vsel %vm519, %v701, 0.0
        %v711 = vadd.f32 %v709, %v710
        %v712 = vsel %vm519, %v690, 0.0
        %v713 = vsel %vm519, %v694, 0.0
        %v714 = vadd.f32 %v712, %v713
        %v715 = vsel %vm519, %v698, 0.0
        %v716 = vadd.f32 %v714, %v715
        %v717 = vsel %vm519, %v702, 0.0
        %v718 = vadd.f32 %v716, %v717
        %v719 = vsel %vm519, %v691, 0.0
        %v720 = vsel %vm519, %v695, 0.0
        %v721 = vadd.f32 %v719, %v720
        %v722 = vsel %vm519, %v699, 0.0
        %v723 = vadd.f32 %v721, %v722
        %v724 = vsel %vm519, %v703, 0.0
        %v725 = vadd.f32 %v723, %v724
        %v726 = vsel %vm519, %v692, 0.0
        %v727 = vsel %vm519, %v696, 0.0
        %v728 = vadd.f32 %v726, %v727
        %v729 = vsel %vm519, %v700, 0.0
        %v730 = vadd.f32 %v728, %v729
        %v731 = vsel %vm519, %v704, 0.0
        %v732 = vadd.f32 %v730, %v731
        %v733 = vsel %vm519, %v711, 0.0
        %v734 = vsel %vm519, %v718, 0.0
        %v735 = vadd.f32 %v733, %v734
        %v736 = vsel %vm519, %v725, 0.0
        %v737 = vadd.f32 %v735, %v736
        %v738 = vsel %vm519, %v732, 0.0
        %v739 = vadd.f32 %v737, %v738
        %v740 = vrot.slane %v739, 4
        %v741 = vadd.f32 %v739, %v740
        %v742 = vrot.slane %v741, 2
        %v743 = vadd.f32 %v741, %v742
        %v744 = vrot.slane %v743, 1
        %v745 = vadd.f32 %v743, %v744
        %v746 = vld [vmem:[%s413] sm:$0xf]
        %v747 = vld [vmem:[%s413 + $0x4] sm:$0xf]
        %v748 = vld [vmem:[%s413 + $0x8] sm:$0xf]
        %v749 = vld [vmem:[%s413 + $0xc] sm:$0xf]
        %v750 = vld [vmem:[%s413 + $0x10] sm:$0xf]
        %v751 = vld [vmem:[%s413 + $0x14] sm:$0xf]
        %v752 = vld [vmem:[%s413 + $0x18] sm:$0xf]
        %v753 = vld [vmem:[%s413 + $0x1c] sm:$0xf]
        %v754 = vld [vmem:[%s5] sm:$0xf]
        %v755 = vld [vmem:[%s5 + $0x4] sm:$0xf]
        %v756 = vld [vmem:[%s4] sm:$0xf]
        %v757 = vld [vmem:[%s4 + $0x4] sm:$0xf]
        %v758 = vld [vmem:[%s4 + $0x8] sm:$0xf]
        %v759 = vld [vmem:[%s4 + $0xc] sm:$0xf]
        %v768 = vunpack.c.l.b16 %v746
        %v769 = vunpack.c.l.b16 %v747
        %v770 = vunpack.c.l.b16 %v748
        %v771 = vunpack.c.l.b16 %v749
        %v772 = vunpack.c.l.b16 %v750
        %v773 = vunpack.c.l.b16 %v751
        %v774 = vunpack.c.l.b16 %v752
        %v775 = vunpack.c.l.b16 %v753
        %v776 = vpack.c.b16 %v769, %v768
        %v777 = vpack.c.b16 %v771, %v770
        %v778 = vpack.c.b16 %v773, %v772
        %v779 = vpack.c.b16 %v775, %v774
        %v782 = vunpack.c.l.b16 %v754
        %v783 = vunpack.c.l.b16 %v755
        %v784 = vpack.c.b16 %v783, %v782
        %vm786 = vcmask 130048
        %v788 = vsel %vm786, %v776, 0
        %v791 = vsel %vm786, %v777, 0
        %v794 = vsel %vm786, %v778, 0
        %v797 = vsel %vm786, %v779, 0
        %799 = vmatpush.bf16.msra.mxu0 0
        %800 = vmatpush.bf16.msra.mxu0 0
        %801 = vmatpush.bf16.msra.mxu0 0
        %802 = vmatpush.bf16.msra.mxu0 0
        %803 = vmatpush.bf16.msra.mxu0 0
        %804 = vmatpush.bf16.msra.mxu0 0
        %805 = vmatpush.bf16.msra.mxu0 0
        %806 = vmatpush.bf16.msra.mxu0 %v784
        %807 = vmatmul.bf16.gmra.mxu0 %v788
        %v808 = vpop.f32.mrf.mxu0
        %v809 = vadd.f32 0.0, %v808
        %v810 = vpop.f32.mrf.mxu0
        %v811 = vadd.f32 0.0, %v810
        %812 = vmatmul.bf16.gmra.mxu0 %v791
        %v813 = vpop.f32.mrf.mxu0
        %v814 = vadd.f32 0.0, %v813
        %v815 = vpop.f32.mrf.mxu0
        %v816 = vadd.f32 0.0, %v815
        %817 = vmatmul.bf16.gmra.mxu0 %v794
        %v818 = vpop.f32.mrf.mxu0
        %v819 = vadd.f32 0.0, %v818
        %v820 = vpop.f32.mrf.mxu0
        %v821 = vadd.f32 0.0, %v820
        %822 = vmatmul.bf16.gmra.mxu0 %v797
        %v823 = vpop.f32.mrf.mxu0
        %v824 = vadd.f32 0.0, %v823
        %v825 = vpop.f32.mrf.mxu0
        %v826 = vadd.f32 0.0, %v825
        %827 = vdwg.mxu0
        %v828 = vpack.c.bf16 %v809, %v809
        %v829 = vpack.c.bf16 %v811, %v811
        %v830 = vpack.c.bf16 %v814, %v814
        %v831 = vpack.c.bf16 %v816, %v816
        %v832 = vpack.c.bf16 %v819, %v819
        %v833 = vpack.c.bf16 %v821, %v821
        %v834 = vpack.c.bf16 %v824, %v824
        %v835 = vpack.c.bf16 %v826, %v826
        %v840 = vunpack.c.l.b16 %v756
        %v841 = vunpack.c.l.b16 %v757
        %v842 = vunpack.c.l.b16 %v758
        %v843 = vunpack.c.l.b16 %v759
        %v844 = vpack.c.b16 %v841, %v840
        %v845 = vpack.c.b16 %v843, %v842
        %v848 = vunpack.c.l.b16 %v828
        %v849 = vunpack.c.l.b16 %v829
        %v850 = vpack.c.b16 %v849, %v848
        %v853 = vsel %vm786, %v844, 0
        %v856 = vsel %vm786, %v845, 0
        %858 = vmatpush.bf16.msra.mxu0 0
        %859 = vmatpush.bf16.msra.mxu0 0
        %860 = vmatpush.bf16.msra.mxu0 0
        %861 = vmatpush.bf16.msra.mxu0 0
        %862 = vmatpush.bf16.msra.mxu0 0
        %863 = vmatpush.bf16.msra.mxu0 0
        %864 = vmatpush.bf16.msra.mxu0 0
        %865 = vmatpush.bf16.msra.mxu0 %v850
        %866 = vmatmul.bf16.gmra.mxu0 %v853
        %v867 = vpop.f32.mrf.mxu0
        %v868 = vadd.f32 0.0, %v867
        %v869 = vpop.f32.mrf.mxu0
        %v870 = vadd.f32 0.0, %v869
        %871 = vmatmul.bf16.gmra.mxu0 %v856
        %v872 = vpop.f32.mrf.mxu0
        %v873 = vadd.f32 0.0, %v872
        %v874 = vpop.f32.mrf.mxu0
        %v875 = vadd.f32 0.0, %v874
        %876 = vdwg.mxu0
        %v879 = vunpack.c.l.b16 %v830
        %v880 = vunpack.c.l.b16 %v831
        %v881 = vpack.c.b16 %v880, %v879
        %883 = vmatpush.bf16.msra.mxu0 0
        %884 = vmatpush.bf16.msra.mxu0 0
        %885 = vmatpush.bf16.msra.mxu0 0
        %886 = vmatpush.bf16.msra.mxu0 0
        %887 = vmatpush.bf16.msra.mxu0 0
        %888 = vmatpush.bf16.msra.mxu0 0
        %889 = vmatpush.bf16.msra.mxu0 0
        %890 = vmatpush.bf16.msra.mxu0 %v881
        %891 = vmatmul.bf16.gmra.mxu0 %v853
        %v892 = vpop.f32.mrf.mxu0
        %v893 = vadd.f32 0.0, %v892
        %v894 = vpop.f32.mrf.mxu0
        %v895 = vadd.f32 0.0, %v894
        %896 = vmatmul.bf16.gmra.mxu0 %v856
        %v897 = vpop.f32.mrf.mxu0
        %v898 = vadd.f32 0.0, %v897
        %v899 = vpop.f32.mrf.mxu0
        %v900 = vadd.f32 0.0, %v899
        %901 = vdwg.mxu0
        %v904 = vunpack.c.l.b16 %v832
        %v905 = vunpack.c.l.b16 %v833
        %v906 = vpack.c.b16 %v905, %v904
        %908 = vmatpush.bf16.msra.mxu0 0
        %909 = vmatpush.bf16.msra.mxu0 0
        %910 = vmatpush.bf16.msra.mxu0 0
        %911 = vmatpush.bf16.msra.mxu0 0
        %912 = vmatpush.bf16.msra.mxu0 0
        %913 = vmatpush.bf16.msra.mxu0 0
        %914 = vmatpush.bf16.msra.mxu0 0
        %915 = vmatpush.bf16.msra.mxu0 %v906
        %916 = vmatmul.bf16.gmra.mxu0 %v853
        %v917 = vpop.f32.mrf.mxu0
        %v918 = vadd.f32 0.0, %v917
        %v919 = vpop.f32.mrf.mxu0
        %v920 = vadd.f32 0.0, %v919
        %921 = vmatmul.bf16.gmra.mxu0 %v856
        %v922 = vpop.f32.mrf.mxu0
        %v923 = vadd.f32 0.0, %v922
        %v924 = vpop.f32.mrf.mxu0
        %v925 = vadd.f32 0.0, %v924
        %926 = vdwg.mxu0
        %v929 = vunpack.c.l.b16 %v834
        %v930 = vunpack.c.l.b16 %v835
        %v931 = vpack.c.b16 %v930, %v929
        %933 = vmatpush.bf16.msra.mxu0 0
        %934 = vmatpush.bf16.msra.mxu0 0
        %935 = vmatpush.bf16.msra.mxu0 0
        %936 = vmatpush.bf16.msra.mxu0 0
        %937 = vmatpush.bf16.msra.mxu0 0
        %938 = vmatpush.bf16.msra.mxu0 0
        %939 = vmatpush.bf16.msra.mxu0 0
        %940 = vmatpush.bf16.msra.mxu0 %v931
        %941 = vmatmul.bf16.gmra.mxu0 %v853
        %v942 = vpop.f32.mrf.mxu0
        %v943 = vadd.f32 0.0, %v942
        %v944 = vpop.f32.mrf.mxu0
        %v945 = vadd.f32 0.0, %v944
        %946 = vmatmul.bf16.gmra.mxu0 %v856
        %v947 = vpop.f32.mrf.mxu0
        %v948 = vadd.f32 0.0, %v947
        %v949 = vpop.f32.mrf.mxu0
        %v950 = vadd.f32 0.0, %v949
        %951 = vdwg.mxu0
        %v952 = vsub.f32 %v868, %v423
        %v953 = vsub.f32 %v870, %v424
        %v954 = vsub.f32 %v873, %v425
        %v955 = vsub.f32 %v875, %v426
        %v956 = vsub.f32 %v893, %v427
        %v957 = vsub.f32 %v895, %v428
        %v958 = vsub.f32 %v898, %v429
        %v959 = vsub.f32 %v900, %v430
        %v960 = vsub.f32 %v918, %v431
        %v961 = vsub.f32 %v920, %v432
        %v962 = vsub.f32 %v923, %v433
        %v963 = vsub.f32 %v925, %v434
        %v964 = vsub.f32 %v943, %v435
        %v965 = vsub.f32 %v945, %v436
        %v966 = vsub.f32 %v948, %v437
        %v967 = vsub.f32 %v950, %v438
        %v968 = vand.u32 2147483647, %v952
        %v969 = vand.u32 2147483647, %v953
        %v970 = vand.u32 2147483647, %v954
        %v971 = vand.u32 2147483647, %v955
        %v972 = vand.u32 2147483647, %v956
        %v973 = vand.u32 2147483647, %v957
        %v974 = vand.u32 2147483647, %v958
        %v975 = vand.u32 2147483647, %v959
        %v976 = vand.u32 2147483647, %v960
        %v977 = vand.u32 2147483647, %v961
        %v978 = vand.u32 2147483647, %v962
        %v979 = vand.u32 2147483647, %v963
        %v980 = vand.u32 2147483647, %v964
        %v981 = vand.u32 2147483647, %v965
        %v982 = vand.u32 2147483647, %v966
        %v983 = vand.u32 2147483647, %v967
        %vm984 = vcmp.lt.f32.partialorder %v968, 1.0
        %vm985 = vcmp.lt.f32.partialorder %v969, 1.0
        %vm986 = vcmp.lt.f32.partialorder %v970, 1.0
        %vm987 = vcmp.lt.f32.partialorder %v971, 1.0
        %vm988 = vcmp.lt.f32.partialorder %v972, 1.0
        %vm989 = vcmp.lt.f32.partialorder %v973, 1.0
        %vm990 = vcmp.lt.f32.partialorder %v974, 1.0
        %vm991 = vcmp.lt.f32.partialorder %v975, 1.0
        %vm992 = vcmp.lt.f32.partialorder %v976, 1.0
        %vm993 = vcmp.lt.f32.partialorder %v977, 1.0
        %vm994 = vcmp.lt.f32.partialorder %v978, 1.0
        %vm995 = vcmp.lt.f32.partialorder %v979, 1.0
        %vm996 = vcmp.lt.f32.partialorder %v980, 1.0
        %vm997 = vcmp.lt.f32.partialorder %v981, 1.0
        %vm998 = vcmp.lt.f32.partialorder %v982, 1.0
        %vm999 = vcmp.lt.f32.partialorder %v983, 1.0
        %v1000 = vmul.f32 %v952, 0.5
        %v1001 = vmul.f32 %v953, 0.5
        %v1002 = vmul.f32 %v954, 0.5
        %v1003 = vmul.f32 %v955, 0.5
        %v1004 = vmul.f32 %v956, 0.5
        %v1005 = vmul.f32 %v957, 0.5
        %v1006 = vmul.f32 %v958, 0.5
        %v1007 = vmul.f32 %v959, 0.5
        %v1008 = vmul.f32 %v960, 0.5
        %v1009 = vmul.f32 %v961, 0.5
        %v1010 = vmul.f32 %v962, 0.5
        %v1011 = vmul.f32 %v963, 0.5
        %v1012 = vmul.f32 %v964, 0.5
        %v1013 = vmul.f32 %v965, 0.5
        %v1014 = vmul.f32 %v966, 0.5
        %v1015 = vmul.f32 %v967, 0.5
        %v1016 = vmul.f32 %v1000, %v952
        %v1017 = vmul.f32 %v1001, %v953
        %v1018 = vmul.f32 %v1002, %v954
        %v1019 = vmul.f32 %v1003, %v955
        %v1020 = vmul.f32 %v1004, %v956
        %v1021 = vmul.f32 %v1005, %v957
        %v1022 = vmul.f32 %v1006, %v958
        %v1023 = vmul.f32 %v1007, %v959
        %v1024 = vmul.f32 %v1008, %v960
        %v1025 = vmul.f32 %v1009, %v961
        %v1026 = vmul.f32 %v1010, %v962
        %v1027 = vmul.f32 %v1011, %v963
        %v1028 = vmul.f32 %v1012, %v964
        %v1029 = vmul.f32 %v1013, %v965
        %v1030 = vmul.f32 %v1014, %v966
        %v1031 = vmul.f32 %v1015, %v967
        %v1032 = vsub.f32 %v968, 0.5
        %v1033 = vsub.f32 %v969, 0.5
        %v1034 = vsub.f32 %v970, 0.5
        %v1035 = vsub.f32 %v971, 0.5
        %v1036 = vsub.f32 %v972, 0.5
        %v1037 = vsub.f32 %v973, 0.5
        %v1038 = vsub.f32 %v974, 0.5
        %v1039 = vsub.f32 %v975, 0.5
        %v1040 = vsub.f32 %v976, 0.5
        %v1041 = vsub.f32 %v977, 0.5
        %v1042 = vsub.f32 %v978, 0.5
        %v1043 = vsub.f32 %v979, 0.5
        %v1044 = vsub.f32 %v980, 0.5
        %v1045 = vsub.f32 %v981, 0.5
        %v1046 = vsub.f32 %v982, 0.5
        %v1047 = vsub.f32 %v983, 0.5
        %v1048 = vsel %vm984, %v1016, %v1032
        %v1049 = vsel %vm985, %v1017, %v1033
        %v1050 = vsel %vm986, %v1018, %v1034
        %v1051 = vsel %vm987, %v1019, %v1035
        %v1052 = vsel %vm988, %v1020, %v1036
        %v1053 = vsel %vm989, %v1021, %v1037
        %v1054 = vsel %vm990, %v1022, %v1038
        %v1055 = vsel %vm991, %v1023, %v1039
        %v1056 = vsel %vm992, %v1024, %v1040
        %v1057 = vsel %vm993, %v1025, %v1041
        %v1058 = vsel %vm994, %v1026, %v1042
        %v1059 = vsel %vm995, %v1027, %v1043
        %v1060 = vsel %vm996, %v1028, %v1044
        %v1061 = vsel %vm997, %v1029, %v1045
        %v1062 = vsel %vm998, %v1030, %v1046
        %v1063 = vsel %vm999, %v1031, %v1047
        %v1064 = vmul.f32 %v1048, %v503
        %v1065 = vmul.f32 %v1049, %v504
        %v1066 = vmul.f32 %v1050, %v505
        %v1067 = vmul.f32 %v1051, %v506
        %v1068 = vmul.f32 %v1052, %v507
        %v1069 = vmul.f32 %v1053, %v508
        %v1070 = vmul.f32 %v1054, %v509
        %v1071 = vmul.f32 %v1055, %v510
        %v1072 = vmul.f32 %v1056, %v511
        %v1073 = vmul.f32 %v1057, %v512
        %v1074 = vmul.f32 %v1058, %v513
        %v1075 = vmul.f32 %v1059, %v514
        %v1076 = vmul.f32 %v1060, %v515
        %v1077 = vmul.f32 %v1061, %v516
        %v1078 = vmul.f32 %v1062, %v517
        %v1079 = vmul.f32 %v1063, %v518
        %v1080 = vsel %vm519, %v1064, 0.0
        %v1081 = vsel %vm519, %v1068, 0.0
        %v1082 = vadd.f32 %v1080, %v1081
        %v1083 = vsel %vm519, %v1072, 0.0
        %v1084 = vadd.f32 %v1082, %v1083
        %v1085 = vsel %vm519, %v1076, 0.0
        %v1086 = vadd.f32 %v1084, %v1085
        %v1087 = vsel %vm519, %v1065, 0.0
        %v1088 = vsel %vm519, %v1069, 0.0
        %v1089 = vadd.f32 %v1087, %v1088
        %v1090 = vsel %vm519, %v1073, 0.0
        %v1091 = vadd.f32 %v1089, %v1090
        %v1092 = vsel %vm519, %v1077, 0.0
        %v1093 = vadd.f32 %v1091, %v1092
        %v1094 = vsel %vm519, %v1066, 0.0
        %v1095 = vsel %vm519, %v1070, 0.0
        %v1096 = vadd.f32 %v1094, %v1095
        %v1097 = vsel %vm519, %v1074, 0.0
        %v1098 = vadd.f32 %v1096, %v1097
        %v1099 = vsel %vm519, %v1078, 0.0
        %v1100 = vadd.f32 %v1098, %v1099
        %v1101 = vsel %vm519, %v1067, 0.0
        %v1102 = vsel %vm519, %v1071, 0.0
        %v1103 = vadd.f32 %v1101, %v1102
        %v1104 = vsel %vm519, %v1075, 0.0
        %v1105 = vadd.f32 %v1103, %v1104
        %v1106 = vsel %vm519, %v1079, 0.0
        %v1107 = vadd.f32 %v1105, %v1106
        %v1108 = vsel %vm519, %v1086, 0.0
        %v1109 = vsel %vm519, %v1093, 0.0
        %v1110 = vadd.f32 %v1108, %v1109
        %v1111 = vsel %vm519, %v1100, 0.0
        %v1112 = vadd.f32 %v1110, %v1111
        %v1113 = vsel %vm519, %v1107, 0.0
        %v1114 = vadd.f32 %v1112, %v1113
        %v1115 = vrot.slane %v1114, 4
        %v1116 = vadd.f32 %v1114, %v1115
        %v1117 = vrot.slane %v1116, 2
        %v1118 = vadd.f32 %v1116, %v1117
        %v1119 = vrot.slane %v1118, 1
        %v1120 = vadd.f32 %v1118, %v1119
        %v1121 = vld [vmem:[%s420] sm:$0xf]
        %v1122 = vld [vmem:[%s420 + $0x4] sm:$0xf]
        %v1123 = vld [vmem:[%s420 + $0x8] sm:$0xf]
        %v1124 = vld [vmem:[%s420 + $0xc] sm:$0xf]
        %v1125 = vld [vmem:[%s420 + $0x10] sm:$0xf]
        %v1126 = vld [vmem:[%s420 + $0x14] sm:$0xf]
        %v1127 = vld [vmem:[%s420 + $0x18] sm:$0xf]
        %v1128 = vld [vmem:[%s420 + $0x1c] sm:$0xf]
        %v1129 = vld [vmem:[%s7] sm:$0xf]
        %v1130 = vld [vmem:[%s6] sm:$0xf]
        %v1131 = vld [vmem:[%s6 + $0x4] sm:$0xf]
        %v1132 = vld [vmem:[%s6 + $0x8] sm:$0xf]
        %v1133 = vld [vmem:[%s6 + $0xc] sm:$0xf]
        %v1142 = vunpack.c.l.b16 %v1121
        %v1143 = vunpack.c.l.b16 %v1122
        %v1144 = vunpack.c.l.b16 %v1123
        %v1145 = vunpack.c.l.b16 %v1124
        %v1146 = vunpack.c.l.b16 %v1125
        %v1147 = vunpack.c.l.b16 %v1126
        %v1148 = vunpack.c.l.b16 %v1127
        %v1149 = vunpack.c.l.b16 %v1128
        %v1150 = vpack.c.b16 %v1143, %v1142
        %v1151 = vpack.c.b16 %v1145, %v1144
        %v1152 = vpack.c.b16 %v1147, %v1146
        %v1153 = vpack.c.b16 %v1149, %v1148
        %vm1154 = vcmask 64512
        %v1156 = vsel %vm1154, %v1150, 0
        %v1159 = vsel %vm1154, %v1151, 0
        %v1162 = vsel %vm1154, %v1152, 0
        %v1165 = vsel %vm1154, %v1153, 0
        %vm1167 = vcmask 1043456
        %v1169 = vsel %vm1167, %v1129, 0
        %1171 = vmatpush.bf16.msra.mxu0 0
        %1172 = vmatpush.bf16.msra.mxu0 0
        %1173 = vmatpush.bf16.msra.mxu0 0
        %1174 = vmatpush.bf16.msra.mxu0 0
        %1175 = vmatpush.bf16.msra.mxu0 0
        %1176 = vmatpush.bf16.msra.mxu0 0
        %1177 = vmatpush.bf16.msra.mxu0 0
        %1178 = vmatpush.bf16.msra.mxu0 %v1169
        %1179 = vmatmul.bf16.gmra.mxu0 %v1156
        %v1180 = vpop.f32.mrf.mxu0
        %v1181 = vadd.f32 0.0, %v1180
        %v1182 = vpop.f32.mrf.mxu0
        %v1183 = vadd.f32 0.0, %v1182
        %1184 = vmatmul.bf16.gmra.mxu0 %v1159
        %v1185 = vpop.f32.mrf.mxu0
        %v1186 = vadd.f32 0.0, %v1185
        %v1187 = vpop.f32.mrf.mxu0
        %v1188 = vadd.f32 0.0, %v1187
        %1189 = vmatmul.bf16.gmra.mxu0 %v1162
        %v1190 = vpop.f32.mrf.mxu0
        %v1191 = vadd.f32 0.0, %v1190
        %v1192 = vpop.f32.mrf.mxu0
        %v1193 = vadd.f32 0.0, %v1192
        %1194 = vmatmul.bf16.gmra.mxu0 %v1165
        %v1195 = vpop.f32.mrf.mxu0
        %v1196 = vadd.f32 0.0, %v1195
        %v1197 = vpop.f32.mrf.mxu0
        %v1198 = vadd.f32 0.0, %v1197
        %1199 = vdwg.mxu0
        %v1200 = vpack.c.bf16 %v1181, %v1181
        %v1201 = vpack.c.bf16 %v1183, %v1183
        %v1202 = vpack.c.bf16 %v1186, %v1186
        %v1203 = vpack.c.bf16 %v1188, %v1188
        %v1204 = vpack.c.bf16 %v1191, %v1191
        %v1205 = vpack.c.bf16 %v1193, %v1193
        %v1206 = vpack.c.bf16 %v1196, %v1196
        %v1207 = vpack.c.bf16 %v1198, %v1198
        %v1212 = vunpack.c.l.b16 %v1130
        %v1213 = vunpack.c.l.b16 %v1131
        %v1214 = vunpack.c.l.b16 %v1132
        %v1215 = vunpack.c.l.b16 %v1133
        %v1216 = vpack.c.b16 %v1213, %v1212
        %v1217 = vpack.c.b16 %v1215, %v1214
        %v1220 = vunpack.c.l.b16 %v1200
        %v1221 = vunpack.c.l.b16 %v1201
        %v1222 = vpack.c.b16 %v1221, %v1220
        %v1225 = vsel %vm786, %v1216, 0
        %v1228 = vsel %vm786, %v1217, 0
        %1230 = vmatpush.bf16.msra.mxu0 0
        %1231 = vmatpush.bf16.msra.mxu0 0
        %1232 = vmatpush.bf16.msra.mxu0 0
        %1233 = vmatpush.bf16.msra.mxu0 0
        %1234 = vmatpush.bf16.msra.mxu0 0
        %1235 = vmatpush.bf16.msra.mxu0 0
        %1236 = vmatpush.bf16.msra.mxu0 0
        %1237 = vmatpush.bf16.msra.mxu0 %v1222
        %1238 = vmatmul.bf16.gmra.mxu0 %v1225
        %v1239 = vpop.f32.mrf.mxu0
        %v1240 = vadd.f32 0.0, %v1239
        %v1241 = vpop.f32.mrf.mxu0
        %v1242 = vadd.f32 0.0, %v1241
        %1243 = vmatmul.bf16.gmra.mxu0 %v1228
        %v1244 = vpop.f32.mrf.mxu0
        %v1245 = vadd.f32 0.0, %v1244
        %v1246 = vpop.f32.mrf.mxu0
        %v1247 = vadd.f32 0.0, %v1246
        %1248 = vdwg.mxu0
        %v1251 = vunpack.c.l.b16 %v1202
        %v1252 = vunpack.c.l.b16 %v1203
        %v1253 = vpack.c.b16 %v1252, %v1251
        %1255 = vmatpush.bf16.msra.mxu0 0
        %1256 = vmatpush.bf16.msra.mxu0 0
        %1257 = vmatpush.bf16.msra.mxu0 0
        %1258 = vmatpush.bf16.msra.mxu0 0
        %1259 = vmatpush.bf16.msra.mxu0 0
        %1260 = vmatpush.bf16.msra.mxu0 0
        %1261 = vmatpush.bf16.msra.mxu0 0
        %1262 = vmatpush.bf16.msra.mxu0 %v1253
        %1263 = vmatmul.bf16.gmra.mxu0 %v1225
        %v1264 = vpop.f32.mrf.mxu0
        %v1265 = vadd.f32 0.0, %v1264
        %v1266 = vpop.f32.mrf.mxu0
        %v1267 = vadd.f32 0.0, %v1266
        %1268 = vmatmul.bf16.gmra.mxu0 %v1228
        %v1269 = vpop.f32.mrf.mxu0
        %v1270 = vadd.f32 0.0, %v1269
        %v1271 = vpop.f32.mrf.mxu0
        %v1272 = vadd.f32 0.0, %v1271
        %1273 = vdwg.mxu0
        %v1276 = vunpack.c.l.b16 %v1204
        %v1277 = vunpack.c.l.b16 %v1205
        %v1278 = vpack.c.b16 %v1277, %v1276
        %1280 = vmatpush.bf16.msra.mxu0 0
        %1281 = vmatpush.bf16.msra.mxu0 0
        %1282 = vmatpush.bf16.msra.mxu0 0
        %1283 = vmatpush.bf16.msra.mxu0 0
        %1284 = vmatpush.bf16.msra.mxu0 0
        %1285 = vmatpush.bf16.msra.mxu0 0
        %1286 = vmatpush.bf16.msra.mxu0 0
        %1287 = vmatpush.bf16.msra.mxu0 %v1278
        %1288 = vmatmul.bf16.gmra.mxu0 %v1225
        %v1289 = vpop.f32.mrf.mxu0
        %v1290 = vadd.f32 0.0, %v1289
        %v1291 = vpop.f32.mrf.mxu0
        %v1292 = vadd.f32 0.0, %v1291
        %1293 = vmatmul.bf16.gmra.mxu0 %v1228
        %v1294 = vpop.f32.mrf.mxu0
        %v1295 = vadd.f32 0.0, %v1294
        %v1296 = vpop.f32.mrf.mxu0
        %v1297 = vadd.f32 0.0, %v1296
        %1298 = vdwg.mxu0
        %v1301 = vunpack.c.l.b16 %v1206
        %v1302 = vunpack.c.l.b16 %v1207
        %v1303 = vpack.c.b16 %v1302, %v1301
        %1305 = vmatpush.bf16.msra.mxu0 0
        %1306 = vmatpush.bf16.msra.mxu0 0
        %1307 = vmatpush.bf16.msra.mxu0 0
        %1308 = vmatpush.bf16.msra.mxu0 0
        %1309 = vmatpush.bf16.msra.mxu0 0
        %1310 = vmatpush.bf16.msra.mxu0 0
        %1311 = vmatpush.bf16.msra.mxu0 0
        %1312 = vmatpush.bf16.msra.mxu0 %v1303
        %1313 = vmatmul.bf16.gmra.mxu0 %v1225
        %v1314 = vpop.f32.mrf.mxu0
        %v1315 = vadd.f32 0.0, %v1314
        %v1316 = vpop.f32.mrf.mxu0
        %v1317 = vadd.f32 0.0, %v1316
        %1318 = vmatmul.bf16.gmra.mxu0 %v1228
        %v1319 = vpop.f32.mrf.mxu0
        %v1320 = vadd.f32 0.0, %v1319
        %v1321 = vpop.f32.mrf.mxu0
        %v1322 = vadd.f32 0.0, %v1321
        %1323 = vdwg.mxu0
        %v1324 = vsub.f32 %v1240, %v423
        %v1325 = vsub.f32 %v1242, %v424
        %v1326 = vsub.f32 %v1245, %v425
        %v1327 = vsub.f32 %v1247, %v426
        %v1328 = vsub.f32 %v1265, %v427
        %v1329 = vsub.f32 %v1267, %v428
        %v1330 = vsub.f32 %v1270, %v429
        %v1331 = vsub.f32 %v1272, %v430
        %v1332 = vsub.f32 %v1290, %v431
        %v1333 = vsub.f32 %v1292, %v432
        %v1334 = vsub.f32 %v1295, %v433
        %v1335 = vsub.f32 %v1297, %v434
        %v1336 = vsub.f32 %v1315, %v435
        %v1337 = vsub.f32 %v1317, %v436
        %v1338 = vsub.f32 %v1320, %v437
        %v1339 = vsub.f32 %v1322, %v438
        %v1340 = vand.u32 2147483647, %v1324
        %v1341 = vand.u32 2147483647, %v1325
        %v1342 = vand.u32 2147483647, %v1326
        %v1343 = vand.u32 2147483647, %v1327
        %v1344 = vand.u32 2147483647, %v1328
        %v1345 = vand.u32 2147483647, %v1329
        %v1346 = vand.u32 2147483647, %v1330
        %v1347 = vand.u32 2147483647, %v1331
        %v1348 = vand.u32 2147483647, %v1332
        %v1349 = vand.u32 2147483647, %v1333
        %v1350 = vand.u32 2147483647, %v1334
        %v1351 = vand.u32 2147483647, %v1335
        %v1352 = vand.u32 2147483647, %v1336
        %v1353 = vand.u32 2147483647, %v1337
        %v1354 = vand.u32 2147483647, %v1338
        %v1355 = vand.u32 2147483647, %v1339
        %vm1356 = vcmp.lt.f32.partialorder %v1340, 1.0
        %vm1357 = vcmp.lt.f32.partialorder %v1341, 1.0
        %vm1358 = vcmp.lt.f32.partialorder %v1342, 1.0
        %vm1359 = vcmp.lt.f32.partialorder %v1343, 1.0
        %vm1360 = vcmp.lt.f32.partialorder %v1344, 1.0
        %vm1361 = vcmp.lt.f32.partialorder %v1345, 1.0
        %vm1362 = vcmp.lt.f32.partialorder %v1346, 1.0
        %vm1363 = vcmp.lt.f32.partialorder %v1347, 1.0
        %vm1364 = vcmp.lt.f32.partialorder %v1348, 1.0
        %vm1365 = vcmp.lt.f32.partialorder %v1349, 1.0
        %vm1366 = vcmp.lt.f32.partialorder %v1350, 1.0
        %vm1367 = vcmp.lt.f32.partialorder %v1351, 1.0
        %vm1368 = vcmp.lt.f32.partialorder %v1352, 1.0
        %vm1369 = vcmp.lt.f32.partialorder %v1353, 1.0
        %vm1370 = vcmp.lt.f32.partialorder %v1354, 1.0
        %vm1371 = vcmp.lt.f32.partialorder %v1355, 1.0
        %v1372 = vmul.f32 %v1324, 0.5
        %v1373 = vmul.f32 %v1325, 0.5
        %v1374 = vmul.f32 %v1326, 0.5
        %v1375 = vmul.f32 %v1327, 0.5
        %v1376 = vmul.f32 %v1328, 0.5
        %v1377 = vmul.f32 %v1329, 0.5
        %v1378 = vmul.f32 %v1330, 0.5
        %v1379 = vmul.f32 %v1331, 0.5
        %v1380 = vmul.f32 %v1332, 0.5
        %v1381 = vmul.f32 %v1333, 0.5
        %v1382 = vmul.f32 %v1334, 0.5
        %v1383 = vmul.f32 %v1335, 0.5
        %v1384 = vmul.f32 %v1336, 0.5
        %v1385 = vmul.f32 %v1337, 0.5
        %v1386 = vmul.f32 %v1338, 0.5
        %v1387 = vmul.f32 %v1339, 0.5
        %v1388 = vmul.f32 %v1372, %v1324
        %v1389 = vmul.f32 %v1373, %v1325
        %v1390 = vmul.f32 %v1374, %v1326
        %v1391 = vmul.f32 %v1375, %v1327
        %v1392 = vmul.f32 %v1376, %v1328
        %v1393 = vmul.f32 %v1377, %v1329
        %v1394 = vmul.f32 %v1378, %v1330
        %v1395 = vmul.f32 %v1379, %v1331
        %v1396 = vmul.f32 %v1380, %v1332
        %v1397 = vmul.f32 %v1381, %v1333
        %v1398 = vmul.f32 %v1382, %v1334
        %v1399 = vmul.f32 %v1383, %v1335
        %v1400 = vmul.f32 %v1384, %v1336
        %v1401 = vmul.f32 %v1385, %v1337
        %v1402 = vmul.f32 %v1386, %v1338
        %v1403 = vmul.f32 %v1387, %v1339
        %v1404 = vsub.f32 %v1340, 0.5
        %v1405 = vsub.f32 %v1341, 0.5
        %v1406 = vsub.f32 %v1342, 0.5
        %v1407 = vsub.f32 %v1343, 0.5
        %v1408 = vsub.f32 %v1344, 0.5
        %v1409 = vsub.f32 %v1345, 0.5
        %v1410 = vsub.f32 %v1346, 0.5
        %v1411 = vsub.f32 %v1347, 0.5
        %v1412 = vsub.f32 %v1348, 0.5
        %v1413 = vsub.f32 %v1349, 0.5
        %v1414 = vsub.f32 %v1350, 0.5
        %v1415 = vsub.f32 %v1351, 0.5
        %v1416 = vsub.f32 %v1352, 0.5
        %v1417 = vsub.f32 %v1353, 0.5
        %v1418 = vsub.f32 %v1354, 0.5
        %v1419 = vsub.f32 %v1355, 0.5
        %v1420 = vsel %vm1356, %v1388, %v1404
        %v1421 = vsel %vm1357, %v1389, %v1405
        %v1422 = vsel %vm1358, %v1390, %v1406
        %v1423 = vsel %vm1359, %v1391, %v1407
        %v1424 = vsel %vm1360, %v1392, %v1408
        %v1425 = vsel %vm1361, %v1393, %v1409
        %v1426 = vsel %vm1362, %v1394, %v1410
        %v1427 = vsel %vm1363, %v1395, %v1411
        %v1428 = vsel %vm1364, %v1396, %v1412
        %v1429 = vsel %vm1365, %v1397, %v1413
        %v1430 = vsel %vm1366, %v1398, %v1414
        %v1431 = vsel %vm1367, %v1399, %v1415
        %v1432 = vsel %vm1368, %v1400, %v1416
        %v1433 = vsel %vm1369, %v1401, %v1417
        %v1434 = vsel %vm1370, %v1402, %v1418
        %v1435 = vsel %vm1371, %v1403, %v1419
        %v1436 = vmul.f32 %v1420, %v503
        %v1437 = vmul.f32 %v1421, %v504
        %v1438 = vmul.f32 %v1422, %v505
        %v1439 = vmul.f32 %v1423, %v506
        %v1440 = vmul.f32 %v1424, %v507
        %v1441 = vmul.f32 %v1425, %v508
        %v1442 = vmul.f32 %v1426, %v509
        %v1443 = vmul.f32 %v1427, %v510
        %v1444 = vmul.f32 %v1428, %v511
        %v1445 = vmul.f32 %v1429, %v512
        %v1446 = vmul.f32 %v1430, %v513
        %v1447 = vmul.f32 %v1431, %v514
        %v1448 = vmul.f32 %v1432, %v515
        %v1449 = vmul.f32 %v1433, %v516
        %v1450 = vmul.f32 %v1434, %v517
        %v1451 = vmul.f32 %v1435, %v518
        %v1452 = vsel %vm519, %v1436, 0.0
        %v1453 = vsel %vm519, %v1440, 0.0
        %v1454 = vadd.f32 %v1452, %v1453
        %v1455 = vsel %vm519, %v1444, 0.0
        %v1456 = vadd.f32 %v1454, %v1455
        %v1457 = vsel %vm519, %v1448, 0.0
        %v1458 = vadd.f32 %v1456, %v1457
        %v1459 = vsel %vm519, %v1437, 0.0
        %v1460 = vsel %vm519, %v1441, 0.0
        %v1461 = vadd.f32 %v1459, %v1460
        %v1462 = vsel %vm519, %v1445, 0.0
        %v1463 = vadd.f32 %v1461, %v1462
        %v1464 = vsel %vm519, %v1449, 0.0
        %v1465 = vadd.f32 %v1463, %v1464
        %v1466 = vsel %vm519, %v1438, 0.0
        %v1467 = vsel %vm519, %v1442, 0.0
        %v1468 = vadd.f32 %v1466, %v1467
        %v1469 = vsel %vm519, %v1446, 0.0
        %v1470 = vadd.f32 %v1468, %v1469
        %v1471 = vsel %vm519, %v1450, 0.0
        %v1472 = vadd.f32 %v1470, %v1471
        %v1473 = vsel %vm519, %v1439, 0.0
        %v1474 = vsel %vm519, %v1443, 0.0
        %v1475 = vadd.f32 %v1473, %v1474
        %v1476 = vsel %vm519, %v1447, 0.0
        %v1477 = vadd.f32 %v1475, %v1476
        %v1478 = vsel %vm519, %v1451, 0.0
        %v1479 = vadd.f32 %v1477, %v1478
        %v1480 = vsel %vm519, %v1458, 0.0
        %v1481 = vsel %vm519, %v1465, 0.0
        %v1482 = vadd.f32 %v1480, %v1481
        %v1483 = vsel %vm519, %v1472, 0.0
        %v1484 = vadd.f32 %v1482, %v1483
        %v1485 = vsel %vm519, %v1479, 0.0
        %v1486 = vadd.f32 %v1484, %v1485
        %v1487 = vrot.slane %v1486, 4
        %v1488 = vadd.f32 %v1486, %v1487
        %v1489 = vrot.slane %v1488, 2
        %v1490 = vadd.f32 %v1488, %v1489
        %v1491 = vrot.slane %v1490, 1
        %v1492 = vadd.f32 %v1490, %v1491
        %vm1493 = vcmask 1040384
        %v1494 = vsel %vm1493, %v745, %v1120
        %vm1495 = vcmask 1041408
        %v1496 = vsel %vm1495, %v1494, %v1492
        %vm1497 = vcmask 1042432
        %v1498 = vsel %vm1497, %v1496, %v560
        %vm1499 = vcmask 257024
        %1500 = vst.msk [vmem:[%s405] sm:$0xf] %vm1499, %v1498
        %s1501 = sand.u32 %s224, 1
        %s1502 = scalar_lea.sflag [#allocation4], %s1501
        %s1503 = sand.u32 %s224, 1
        %s1504 = smul.addr %s1503, 4
        %s1505 = scalar_lea.vmem [#allocation7], %s1504
        // Predicated region
        $region61: #{tpu_custom_call.1} parent=51 // pred_check
          %p1506 = pneg %p234
        $region62: #{tpu_custom_call.1} parent=51 // pred_check_branch
          %1508 = sbr.rel (%p1506) target = $region64
        $region63: #{tpu_custom_call.1} parent=51 // pred_region
          %1510 = vsyncadd %s1502, 0
          %s1511 = smul.addr %s28, 4
          %s1512 = scalar_lea.hbm %s8, %s1511
          %s1514 = sshll.u32 %s1505, 4
          %s1515 = int_to_ptr.vmem [resolvable:$true] %s1514
          %s1516 = sshll.u32 %s1512, 4
          %s1517 = int_to_ptr.hbm [resolvable:$true] %s1516
          %1519 = dma.vmem_to_hbm [thread:$0]  %s1515, 64, %s1517, %s1502
        $region64: #{tpu_custom_call.1} parent=51 // pred_fallthru
          _
      $region52: #{tpu_custom_call.1} parent=5 // pred_fallthru
        _
      %p1520 = scmp.le.s32.totalorder 2, %s23
      // Predicated region
      $region65: #{tpu_custom_call.1} parent=5 // pred_check
        %p1521 = pneg %p1520
      $region66: #{tpu_custom_call.1} parent=5 // pred_check_branch
        %1523 = sbr.rel (%p1521) target = $region68
      $region67: #{tpu_custom_call.1} parent=5 // pred_region
        %s1524 = ssub.s32 %s23, 2
        // Predicated region
        $region69: #{tpu_custom_call.1} parent=67 // pred_check
          %p1525 = pneg %p240
        $region70: #{tpu_custom_call.1} parent=67 // pred_check_branch
          %1527 = sbr.rel (%p1525) target = $region72
        $region71: #{tpu_custom_call.1} parent=67 // pred_region
          %s1528 = sand.u32 %s225, 1
          %s1529 = scalar_lea.sflag [#allocation4], %s1528
          %s1530 = sand.u32 %s225, 1
          %s1531 = smul.addr %s1530, 4
          %s1532 = scalar_lea.vmem [#allocation7], %s1531
          %1534 = dma.done %s1529, 64
        $region72: #{tpu_custom_call.1} parent=67 // pred_fallthru
          _
      $region68: #{tpu_custom_call.1} parent=5 // pred_fallthru
        _
    $region6: #{tpu_custom_call.1} parent=1 // loop_footer
      %s27 = sadd.s32 1, %s23
    $region7: #{tpu_custom_call.1} parent=1 // loop_footer_branch
      %22 = sbr.rel target = $region3
    $region8: #{tpu_custom_call.1} parent=1 // loop_exit
      _
    %1535 = vsyncpa [#allocation3], 1
    %s1536 = scalar_lea.sflag [#allocation3], 1
    %1537 = vsyncpa %s1536, 1
    %1538 = vsyncpa [#allocation6], 1
    %s1539 = scalar_lea.sflag [#allocation6], 1
    %1540 = vsyncpa %s1539, 1
    %1541 = vsyncpa [#allocation4], 1
    %s1542 = scalar_lea.sflag [#allocation4], 1
    %1543 = vsyncpa %s1542, 1

</llo_original>
